<compile_context>
chip_gen: v6e
topology: v6e:2x2x1
jax: 0.10.0
libtpu: 0.0.40
codegen_flags: <defaults>
</compile_context>

<pallas_src>
import math

import jax
import jax.numpy as jnp
from jax import lax
from jax.experimental import pallas as pl
from jax.experimental.pallas import tpu as pltpu


def order_network_kernel(state_ref, wih_ref, whh_ref, b_ref, fcw_ref, fcb_ref,
                         probs_ref, attn_ref):
    """Whole forward pass in one kernel.

    state_ref : (B, T, I)   batch-first input (as in the PyTorch module)
    wih_ref   : (I, 8H)     [W_ih_fwd | W_ih_bwd]  (pre-transposed, lane-concat)
    whh_ref   : (2H, 4H)    [W_hh_fwd ; W_hh_bwd]  (pre-transposed, row-concat)
    b_ref     : (1, 8H)     [b_fwd | b_bwd]        (b_ih + b_hh per direction)
    fcw_ref   : (2H, A)     fc weight (pre-transposed)
    fcb_ref   : (1, A)      fc bias
    probs_ref : (B, A)      softmax(fc(ctx[:, -1, :]))
    attn_ref  : (B, T, T)   attention weights w_ord
    """
    B, T, I = state_ref.shape
    H4 = whh_ref.shape[1]          # 4H
    H = H4 // 4
    H2 = 2 * H
    f32 = jnp.float32
    bf16 = jnp.bfloat16

    # ---- hoisted input->gate projection (both directions, all timesteps) ----
    x2 = state_ref[...].reshape(B * T, I)                                   # (B*T, I)
    gx = jnp.dot(x2, wih_ref[...], preferred_element_type=f32) + b_ref[...]  # (B*T, 8H)
    gx = gx.reshape(B, T, 2 * H4)                                           # (B, T, 8H)

    # Hoist every per-step gate slice off the serial chain (static indices;
    # none of these depend on h/c).
    gx_f = [gx[:, t, 0:H4] for t in range(T)]              # fwd gates at time t
    gx_b = [gx[:, T - 1 - t, H4:2 * H4] for t in range(T)]  # bwd gates, time-reversed

    # Split the recurrent weights once; bf16 operands -> one MXU pass per step.
    whh_f = whh_ref[0:H, :].astype(bf16)                   # (H, 4H)
    whh_b = whh_ref[H:H2, :].astype(bf16)                  # (H, 4H)

    h_f = jnp.zeros((B, H), f32)
    c_f = jnp.zeros((B, H), f32)
    h_b = jnp.zeros((B, H), f32)
    c_b = jnp.zeros((B, H), f32)

    h_f_steps = []
    h_b_steps = []

    def lstm_cell(h, c, gates_x, whh_d):
        # gates_x already contains x @ W_ih + b for this direction & timestep.
        gates = jnp.dot(h.astype(bf16), whh_d,
                        preferred_element_type=f32) + gates_x               # (B, 4H)
        # PyTorch gate order: i, f, g, o.  Sigmoid full-width (one vreg-op),
        # tanh only on the g slice (EUP is a single slot).
        sig = jax.nn.sigmoid(gates)
        i_g = sig[:, 0:H]
        f_g = sig[:, H:2 * H]
        o_g = sig[:, 3 * H:4 * H]
        g_g = jnp.tanh(gates[:, 2 * H:3 * H])
        c_new = f_g * c + i_g * g_g
        h_new = o_g * jnp.tanh(c_new)
        return h_new, c_new

    # ---- fully-unrolled recurrence: two independent (fwd/bwd) chains ----
    for t in range(T):
        h_f, c_f = lstm_cell(h_f, c_f, gx_f[t], whh_f)
        h_b, c_b = lstm_cell(h_b, c_b, gx_b[t], whh_b)
        h_f_steps.append(h_f)          # forward hidden for timestep t
        h_b_steps.append(h_b)          # backward hidden for timestep T-1-t

    # Assemble bi-LSTM outputs once (no per-step VMEM scratch round-trip).
    hs_f = jnp.stack(h_f_steps, axis=1)                    # (B, T, H)
    hs_b = jnp.stack(h_b_steps[::-1], axis=1)              # (B, T, H) time-ordered
    xb = jnp.concatenate([hs_f, hs_b], axis=-1)            # (B, T, 2H)

    # ---- batched scaled-dot self-attention + FC + softmax ----
    scale = 1.0 / math.sqrt(float(H2))
    scores = jnp.einsum('btd,bsd->bts', xb, xb,
                        preferred_element_type=f32) * scale                # (B, T, T)
    w = jax.nn.softmax(scores, axis=-1)
    attn_ref[...] = w

    # fc only consumes the last attended timestep: ctx[:, -1, :]
    w_last = w[:, T - 1:T, :]                                              # (B, 1, T)
    ctx = jnp.einsum('bqs,bsd->bqd', w_last, xb,
                     preferred_element_type=f32)                           # (B, 1, 2H)
    logits = jnp.dot(ctx[:, 0, :], fcw_ref[...],
                     preferred_element_type=f32) + fcb_ref[...]            # (B, A)
    probs_ref[...] = jax.nn.softmax(logits, axis=-1)


@jax.jit
def order_network_forward(state, params):
    """state: (B, T, num_inputs) float32  (batch-first, like the PyTorch module)."""
    B, T, I = state.shape
    H = params["w_hh"].shape[0] // 2
    A = params["fcw"].shape[1]

    vmem = pl.BlockSpec(memory_space=pltpu.MemorySpace.VMEM)
    probs, w_ord = pl.pallas_call(
        order_network_kernel,
        out_shape=(jax.ShapeDtypeStruct((B, A), jnp.float32),
                   jax.ShapeDtypeStruct((B, T, T), jnp.float32)),
        in_specs=[vmem] * 6,
        out_specs=(vmem, vmem),
    )(state, params["w_ih"], params["w_hh"], params["b"],
      params["fcw"], params["fcb"])

    # Glue mirroring the PyTorch return values (fused into the same jit).
    prob = jnp.max(probs[0, :])                 # max(out[0, :])
    action = jnp.argmax(probs, axis=1)          # torch.argmax(out, dim=1)
    return probs, prob, action, w_ord


def init_params(key, num_inputs, num_actions, hidden_size):
    """Deterministic synthetic parameters (PyTorch-style U(-1/sqrt(H), 1/sqrt(H))),
    pre-packed for the kernel: W_ih lane-concat, W_hh row-concat, biases combined."""
    H = hidden_size
    bound = 1.0 / (H ** 0.5)
    ks = jax.random.split(key, 8)

    def u(k, shape):
        return jax.random.uniform(k, shape, jnp.float32, -bound, bound)

    wih_f = u(ks[0], (num_inputs, 4 * H))
    whh_f = u(ks[1], (H, 4 * H))
    b_f = u(ks[2], (1, 4 * H))                  # b_ih + b_hh combined (fwd)
    wih_b = u(ks[3], (num_inputs, 4 * H))
    whh_b = u(ks[4], (H, 4 * H))
    b_b = u(ks[5], (1, 4 * H))                  # b_ih + b_hh combined (bwd)

    return dict(
        w_ih=jnp.concatenate([wih_f, wih_b], axis=1),   # (I, 8H)
        w_hh=jnp.concatenate([whh_f, whh_b], axis=0),   # (2H, 4H)
        b=jnp.concatenate([b_f, b_b], axis=1),          # (1, 8H)
        fcw=u(ks[6], (2 * H, num_actions)),             # fc weight, pre-transposed
        fcb=u(ks[7], (1, num_actions)),
    )


if __name__ == "__main__":
    B, T = 2, 8                 # batch, sequence length
    NUM_INPUTS = 4
    HIDDEN = 32
    NUM_ACTIONS = 2             # act() samples randint(0, 1) -> 2 actions

    key = jax.random.PRNGKey(0)
    pkey, skey = jax.random.split(key)
    params = init_params(pkey, NUM_INPUTS, NUM_ACTIONS, HIDDEN)
    state = jax.random.normal(skey, (B, T, NUM_INPUTS), jnp.float32)

    out, prob, action, w_ord = order_network_forward(state, params)
    jax.block_until_ready((out, prob, action, w_ord))

    assert out.shape == (B, NUM_ACTIONS)
    assert w_ord.shape == (B, T, T)
    assert action.shape == (B,)
    print("KERNEL_OK")
</pallas_src>

<mosaic_0001>
module attributes {stable_mosaic.version = 11 : i64} {
  func.func @order_network_kernel(%arg0: memref<2x8x4xf32, #tpu.memory_space<vmem>>, %arg1: memref<4x256xf32, #tpu.memory_space<vmem>>, %arg2: memref<64x128xf32, #tpu.memory_space<vmem>>, %arg3: memref<1x256xf32, #tpu.memory_space<vmem>>, %arg4: memref<64x2xf32, #tpu.memory_space<vmem>>, %arg5: memref<1x2xf32, #tpu.memory_space<vmem>>, %arg6: memref<2x2xf32, #tpu.memory_space<vmem>>, %arg7: memref<2x8x8xf32, #tpu.memory_space<vmem>>) attributes {dimension_semantics = [], scalar_prefetch = 0 : i64, scratch_operands = 0 : i64, tpu.core_type = #tpu.core_type<tc>} {
    %c0 = arith.constant 0 : index
    %c0_0 = arith.constant 0 : index
    %c0_1 = arith.constant 0 : index
    %0 = vector.load %arg0[%c0, %c0_0, %c0_1] : memref<2x8x4xf32, #tpu.memory_space<vmem>>, vector<2x8x4xf32>
    %1 = vector.shape_cast %0 : vector<2x8x4xf32> to vector<16x4xf32>
    %c0_2 = arith.constant 0 : index
    %c0_3 = arith.constant 0 : index
    %2 = vector.load %arg1[%c0_2, %c0_3] : memref<4x256xf32, #tpu.memory_space<vmem>>, vector<4x256xf32>
    %cst = arith.constant dense<0.000000e+00> : vector<16x256xf32>
    %3 = tpu.matmul %1, %2, %cst {dimension_numbers = #tpu.dot_dimension_numbers<[1], [0], [0], [1], [0, 0, 1, 1], [], []>} : vector<16x4xf32>, vector<4x256xf32>, vector<16x256xf32> -> vector<16x256xf32>
    %c0_4 = arith.constant 0 : index
    %c0_5 = arith.constant 0 : index
    %4 = vector.load %arg3[%c0_4, %c0_5] : memref<1x256xf32, #tpu.memory_space<vmem>>, vector<1x256xf32>
    %5 = vector.broadcast %4 : vector<1x256xf32> to vector<16x256xf32>
    %6 = arith.addf %3, %5 : vector<16x256xf32>
    %7 = vector.shape_cast %6 : vector<16x256xf32> to vector<2x8x256xf32>
    %8 = vector.extract_strided_slice %7 {offsets = [0, 0, 0], sizes = [2, 1, 128], strides = [1, 1, 1]} : vector<2x8x256xf32> to vector<2x1x128xf32>
    %9 = vector.shape_cast %8 : vector<2x1x128xf32> to vector<2x128xf32>
    %10 = vector.extract_strided_slice %7 {offsets = [0, 1, 0], sizes = [2, 1, 128], strides = [1, 1, 1]} : vector<2x8x256xf32> to vector<2x1x128xf32>
    %11 = vector.shape_cast %10 : vector<2x1x128xf32> to vector<2x128xf32>
    %12 = vector.extract_strided_slice %7 {offsets = [0, 2, 0], sizes = [2, 1, 128], strides = [1, 1, 1]} : vector<2x8x256xf32> to vector<2x1x128xf32>
    %13 = vector.shape_cast %12 : vector<2x1x128xf32> to vector<2x128xf32>
    %14 = vector.extract_strided_slice %7 {offsets = [0, 3, 0], sizes = [2, 1, 128], strides = [1, 1, 1]} : vector<2x8x256xf32> to vector<2x1x128xf32>
    %15 = vector.shape_cast %14 : vector<2x1x128xf32> to vector<2x128xf32>
    %16 = vector.extract_strided_slice %7 {offsets = [0, 4, 0], sizes = [2, 1, 128], strides = [1, 1, 1]} : vector<2x8x256xf32> to vector<2x1x128xf32>
    %17 = vector.shape_cast %16 : vector<2x1x128xf32> to vector<2x128xf32>
    %18 = vector.extract_strided_slice %7 {offsets = [0, 5, 0], sizes = [2, 1, 128], strides = [1, 1, 1]} : vector<2x8x256xf32> to vector<2x1x128xf32>
    %19 = vector.shape_cast %18 : vector<2x1x128xf32> to vector<2x128xf32>
    %20 = vector.extract_strided_slice %7 {offsets = [0, 6, 0], sizes = [2, 1, 128], strides = [1, 1, 1]} : vector<2x8x256xf32> to vector<2x1x128xf32>
    %21 = vector.shape_cast %20 : vector<2x1x128xf32> to vector<2x128xf32>
    %22 = vector.extract_strided_slice %7 {offsets = [0, 7, 0], sizes = [2, 1, 128], strides = [1, 1, 1]} : vector<2x8x256xf32> to vector<2x1x128xf32>
    %23 = vector.shape_cast %22 : vector<2x1x128xf32> to vector<2x128xf32>
    %24 = vector.extract_strided_slice %7 {offsets = [0, 7, 128], sizes = [2, 1, 128], strides = [1, 1, 1]} : vector<2x8x256xf32> to vector<2x1x128xf32>
    %25 = vector.shape_cast %24 : vector<2x1x128xf32> to vector<2x128xf32>
    %26 = vector.extract_strided_slice %7 {offsets = [0, 6, 128], sizes = [2, 1, 128], strides = [1, 1, 1]} : vector<2x8x256xf32> to vector<2x1x128xf32>
    %27 = vector.shape_cast %26 : vector<2x1x128xf32> to vector<2x128xf32>
    %28 = vector.extract_strided_slice %7 {offsets = [0, 5, 128], sizes = [2, 1, 128], strides = [1, 1, 1]} : vector<2x8x256xf32> to vector<2x1x128xf32>
    %29 = vector.shape_cast %28 : vector<2x1x128xf32> to vector<2x128xf32>
    %30 = vector.extract_strided_slice %7 {offsets = [0, 4, 128], sizes = [2, 1, 128], strides = [1, 1, 1]} : vector<2x8x256xf32> to vector<2x1x128xf32>
    %31 = vector.shape_cast %30 : vector<2x1x128xf32> to vector<2x128xf32>
    %32 = vector.extract_strided_slice %7 {offsets = [0, 3, 128], sizes = [2, 1, 128], strides = [1, 1, 1]} : vector<2x8x256xf32> to vector<2x1x128xf32>
    %33 = vector.shape_cast %32 : vector<2x1x128xf32> to vector<2x128xf32>
    %34 = vector.extract_strided_slice %7 {offsets = [0, 2, 128], sizes = [2, 1, 128], strides = [1, 1, 1]} : vector<2x8x256xf32> to vector<2x1x128xf32>
    %35 = vector.shape_cast %34 : vector<2x1x128xf32> to vector<2x128xf32>
    %36 = vector.extract_strided_slice %7 {offsets = [0, 1, 128], sizes = [2, 1, 128], strides = [1, 1, 1]} : vector<2x8x256xf32> to vector<2x1x128xf32>
    %37 = vector.shape_cast %36 : vector<2x1x128xf32> to vector<2x128xf32>
    %38 = vector.extract_strided_slice %7 {offsets = [0, 0, 128], sizes = [2, 1, 128], strides = [1, 1, 1]} : vector<2x8x256xf32> to vector<2x1x128xf32>
    %39 = vector.shape_cast %38 : vector<2x1x128xf32> to vector<2x128xf32>
    %c0_6 = arith.constant 0 : index
    %c0_7 = arith.constant 0 : index
    %40 = vector.load %arg2[%c0_6, %c0_7] : memref<64x128xf32, #tpu.memory_space<vmem>>, vector<32x128xf32>
    %41 = arith.truncf %40 : vector<32x128xf32> to vector<32x128xbf16>
    %c32 = arith.constant 32 : index
    %c0_8 = arith.constant 0 : index
    %42 = vector.load %arg2[%c32, %c0_8] : memref<64x128xf32, #tpu.memory_space<vmem>>, vector<32x128xf32>
    %43 = arith.truncf %42 : vector<32x128xf32> to vector<32x128xbf16>
    %cst_9 = arith.constant 0.000000e+00 : f32
    %44 = vector.broadcast %cst_9 : f32 to vector<2x32xf32>
    %cst_10 = arith.constant 0.000000e+00 : f32
    %45 = vector.broadcast %cst_10 : f32 to vector<2x32xf32>
    %cst_11 = arith.constant 0.000000e+00 : f32
    %46 = vector.broadcast %cst_11 : f32 to vector<2x32xf32>
    %cst_12 = arith.constant 0.000000e+00 : f32
    %47 = vector.broadcast %cst_12 : f32 to vector<2x32xf32>
    %48 = arith.truncf %44 : vector<2x32xf32> to vector<2x32xbf16>
    %cst_13 = arith.constant dense<0.000000e+00> : vector<2x128xf32>
    %49 = tpu.matmul %48, %41, %cst_13 {dimension_numbers = #tpu.dot_dimension_numbers<[1], [0], [0], [1], [0, 0, 1, 1], [], []>} : vector<2x32xbf16>, vector<32x128xbf16>, vector<2x128xf32> -> vector<2x128xf32>
    %50 = arith.addf %49, %9 : vector<2x128xf32>
    %51 = arith.negf %50 : vector<2x128xf32>
    %52 = math.exp %51 : vector<2x128xf32>
    %cst_14 = arith.constant 1.000000e+00 : f32
    %53 = vector.broadcast %cst_14 : f32 to vector<2x128xf32>
    %54 = arith.addf %53, %52 : vector<2x128xf32>
    %55 = arith.divf %53, %54 : vector<2x128xf32>
    %56 = vector.extract_strided_slice %55 {offsets = [0, 0], sizes = [2, 32], strides = [1, 1]} : vector<2x128xf32> to vector<2x32xf32>
    %57 = vector.extract_strided_slice %55 {offsets = [0, 32], sizes = [2, 32], strides = [1, 1]} : vector<2x128xf32> to vector<2x32xf32>
    %58 = vector.extract_strided_slice %55 {offsets = [0, 96], sizes = [2, 32], strides = [1, 1]} : vector<2x128xf32> to vector<2x32xf32>
    %59 = vector.extract_strided_slice %50 {offsets = [0, 64], sizes = [2, 32], strides = [1, 1]} : vector<2x128xf32> to vector<2x32xf32>
    %60 = math.tanh %59 : vector<2x32xf32>
    %61 = arith.mulf %57, %45 : vector<2x32xf32>
    %62 = arith.mulf %56, %60 : vector<2x32xf32>
    %63 = arith.addf %61, %62 : vector<2x32xf32>
    %64 = math.tanh %63 : vector<2x32xf32>
    %65 = arith.mulf %58, %64 : vector<2x32xf32>
    %66 = arith.truncf %46 : vector<2x32xf32> to vector<2x32xbf16>
    %cst_15 = arith.constant dense<0.000000e+00> : vector<2x128xf32>
    %67 = tpu.matmul %66, %43, %cst_15 {dimension_numbers = #tpu.dot_dimension_numbers<[1], [0], [0], [1], [0, 0, 1, 1], [], []>} : vector<2x32xbf16>, vector<32x128xbf16>, vector<2x128xf32> -> vector<2x128xf32>
    %68 = arith.addf %67, %25 : vector<2x128xf32>
    %69 = arith.negf %68 : vector<2x128xf32>
    %70 = math.exp %69 : vector<2x128xf32>
    %cst_16 = arith.constant 1.000000e+00 : f32
    %71 = vector.broadcast %cst_16 : f32 to vector<2x128xf32>
    %72 = arith.addf %71, %70 : vector<2x128xf32>
    %73 = arith.divf %71, %72 : vector<2x128xf32>
    %74 = vector.extract_strided_slice %73 {offsets = [0, 0], sizes = [2, 32], strides = [1, 1]} : vector<2x128xf32> to vector<2x32xf32>
    %75 = vector.extract_strided_slice %73 {offsets = [0, 32], sizes = [2, 32], strides = [1, 1]} : vector<2x128xf32> to vector<2x32xf32>
    %76 = vector.extract_strided_slice %73 {offsets = [0, 96], sizes = [2, 32], strides = [1, 1]} : vector<2x128xf32> to vector<2x32xf32>
    %77 = vector.extract_strided_slice %68 {offsets = [0, 64], sizes = [2, 32], strides = [1, 1]} : vector<2x128xf32> to vector<2x32xf32>
    %78 = math.tanh %77 : vector<2x32xf32>
    %79 = arith.mulf %75, %47 : vector<2x32xf32>
    %80 = arith.mulf %74, %78 : vector<2x32xf32>
    %81 = arith.addf %79, %80 : vector<2x32xf32>
    %82 = math.tanh %81 : vector<2x32xf32>
    %83 = arith.mulf %76, %82 : vector<2x32xf32>
    %84 = arith.truncf %65 : vector<2x32xf32> to vector<2x32xbf16>
    %cst_17 = arith.constant dense<0.000000e+00> : vector<2x128xf32>
    %85 = tpu.matmul %84, %41, %cst_17 {dimension_numbers = #tpu.dot_dimension_numbers<[1], [0], [0], [1], [0, 0, 1, 1], [], []>} : vector<2x32xbf16>, vector<32x128xbf16>, vector<2x128xf32> -> vector<2x128xf32>
    %86 = arith.addf %85, %11 : vector<2x128xf32>
    %87 = arith.negf %86 : vector<2x128xf32>
    %88 = math.exp %87 : vector<2x128xf32>
    %cst_18 = arith.constant 1.000000e+00 : f32
    %89 = vector.broadcast %cst_18 : f32 to vector<2x128xf32>
    %90 = arith.addf %89, %88 : vector<2x128xf32>
    %91 = arith.divf %89, %90 : vector<2x128xf32>
    %92 = vector.extract_strided_slice %91 {offsets = [0, 0], sizes = [2, 32], strides = [1, 1]} : vector<2x128xf32> to vector<2x32xf32>
    %93 = vector.extract_strided_slice %91 {offsets = [0, 32], sizes = [2, 32], strides = [1, 1]} : vector<2x128xf32> to vector<2x32xf32>
    %94 = vector.extract_strided_slice %91 {offsets = [0, 96], sizes = [2, 32], strides = [1, 1]} : vector<2x128xf32> to vector<2x32xf32>
    %95 = vector.extract_strided_slice %86 {offsets = [0, 64], sizes = [2, 32], strides = [1, 1]} : vector<2x128xf32> to vector<2x32xf32>
    %96 = math.tanh %95 : vector<2x32xf32>
    %97 = arith.mulf %93, %63 : vector<2x32xf32>
    %98 = arith.mulf %92, %96 : vector<2x32xf32>
    %99 = arith.addf %97, %98 : vector<2x32xf32>
    %100 = math.tanh %99 : vector<2x32xf32>
    %101 = arith.mulf %94, %100 : vector<2x32xf32>
    %102 = arith.truncf %83 : vector<2x32xf32> to vector<2x32xbf16>
    %cst_19 = arith.constant dense<0.000000e+00> : vector<2x128xf32>
    %103 = tpu.matmul %102, %43, %cst_19 {dimension_numbers = #tpu.dot_dimension_numbers<[1], [0], [0], [1], [0, 0, 1, 1], [], []>} : vector<2x32xbf16>, vector<32x128xbf16>, vector<2x128xf32> -> vector<2x128xf32>
    %104 = arith.addf %103, %27 : vector<2x128xf32>
    %105 = arith.negf %104 : vector<2x128xf32>
    %106 = math.exp %105 : vector<2x128xf32>
    %cst_20 = arith.constant 1.000000e+00 : f32
    %107 = vector.broadcast %cst_20 : f32 to vector<2x128xf32>
    %108 = arith.addf %107, %106 : vector<2x128xf32>
    %109 = arith.divf %107, %108 : vector<2x128xf32>
    %110 = vector.extract_strided_slice %109 {offsets = [0, 0], sizes = [2, 32], strides = [1, 1]} : vector<2x128xf32> to vector<2x32xf32>
    %111 = vector.extract_strided_slice %109 {offsets = [0, 32], sizes = [2, 32], strides = [1, 1]} : vector<2x128xf32> to vector<2x32xf32>
    %112 = vector.extract_strided_slice %109 {offsets = [0, 96], sizes = [2, 32], strides = [1, 1]} : vector<2x128xf32> to vector<2x32xf32>
    %113 = vector.extract_strided_slice %104 {offsets = [0, 64], sizes = [2, 32], strides = [1, 1]} : vector<2x128xf32> to vector<2x32xf32>
    %114 = math.tanh %113 : vector<2x32xf32>
    %115 = arith.mulf %111, %81 : vector<2x32xf32>
    %116 = arith.mulf %110, %114 : vector<2x32xf32>
    %117 = arith.addf %115, %116 : vector<2x32xf32>
    %118 = math.tanh %117 : vector<2x32xf32>
    %119 = arith.mulf %112, %118 : vector<2x32xf32>
    %120 = arith.truncf %101 : vector<2x32xf32> to vector<2x32xbf16>
    %cst_21 = arith.constant dense<0.000000e+00> : vector<2x128xf32>
    %121 = tpu.matmul %120, %41, %cst_21 {dimension_numbers = #tpu.dot_dimension_numbers<[1], [0], [0], [1], [0, 0, 1, 1], [], []>} : vector<2x32xbf16>, vector<32x128xbf16>, vector<2x128xf32> -> vector<2x128xf32>
    %122 = arith.addf %121, %13 : vector<2x128xf32>
    %123 = arith.negf %122 : vector<2x128xf32>
    %124 = math.exp %123 : vector<2x128xf32>
    %cst_22 = arith.constant 1.000000e+00 : f32
    %125 = vector.broadcast %cst_22 : f32 to vector<2x128xf32>
    %126 = arith.addf %125, %124 : vector<2x128xf32>
    %127 = arith.divf %125, %126 : vector<2x128xf32>
    %128 = vector.extract_strided_slice %127 {offsets = [0, 0], sizes = [2, 32], strides = [1, 1]} : vector<2x128xf32> to vector<2x32xf32>
    %129 = vector.extract_strided_slice %127 {offsets = [0, 32], sizes = [2, 32], strides = [1, 1]} : vector<2x128xf32> to vector<2x32xf32>
    %130 = vector.extract_strided_slice %127 {offsets = [0, 96], sizes = [2, 32], strides = [1, 1]} : vector<2x128xf32> to vector<2x32xf32>
    %131 = vector.extract_strided_slice %122 {offsets = [0, 64], sizes = [2, 32], strides = [1, 1]} : vector<2x128xf32> to vector<2x32xf32>
    %132 = math.tanh %131 : vector<2x32xf32>
    %133 = arith.mulf %129, %99 : vector<2x32xf32>
    %134 = arith.mulf %128, %132 : vector<2x32xf32>
    %135 = arith.addf %133, %134 : vector<2x32xf32>
    %136 = math.tanh %135 : vector<2x32xf32>
    %137 = arith.mulf %130, %136 : vector<2x32xf32>
    %138 = arith.truncf %119 : vector<2x32xf32> to vector<2x32xbf16>
    %cst_23 = arith.constant dense<0.000000e+00> : vector<2x128xf32>
    %139 = tpu.matmul %138, %43, %cst_23 {dimension_numbers = #tpu.dot_dimension_numbers<[1], [0], [0], [1], [0, 0, 1, 1], [], []>} : vector<2x32xbf16>, vector<32x128xbf16>, vector<2x128xf32> -> vector<2x128xf32>
    %140 = arith.addf %139, %29 : vector<2x128xf32>
    %141 = arith.negf %140 : vector<2x128xf32>
    %142 = math.exp %141 : vector<2x128xf32>
    %cst_24 = arith.constant 1.000000e+00 : f32
    %143 = vector.broadcast %cst_24 : f32 to vector<2x128xf32>
    %144 = arith.addf %143, %142 : vector<2x128xf32>
    %145 = arith.divf %143, %144 : vector<2x128xf32>
    %146 = vector.extract_strided_slice %145 {offsets = [0, 0], sizes = [2, 32], strides = [1, 1]} : vector<2x128xf32> to vector<2x32xf32>
    %147 = vector.extract_strided_slice %145 {offsets = [0, 32], sizes = [2, 32], strides = [1, 1]} : vector<2x128xf32> to vector<2x32xf32>
    %148 = vector.extract_strided_slice %145 {offsets = [0, 96], sizes = [2, 32], strides = [1, 1]} : vector<2x128xf32> to vector<2x32xf32>
    %149 = vector.extract_strided_slice %140 {offsets = [0, 64], sizes = [2, 32], strides = [1, 1]} : vector<2x128xf32> to vector<2x32xf32>
    %150 = math.tanh %149 : vector<2x32xf32>
    %151 = arith.mulf %147, %117 : vector<2x32xf32>
    %152 = arith.mulf %146, %150 : vector<2x32xf32>
    %153 = arith.addf %151, %152 : vector<2x32xf32>
    %154 = math.tanh %153 : vector<2x32xf32>
    %155 = arith.mulf %148, %154 : vector<2x32xf32>
    %156 = arith.truncf %137 : vector<2x32xf32> to vector<2x32xbf16>
    %cst_25 = arith.constant dense<0.000000e+00> : vector<2x128xf32>
    %157 = tpu.matmul %156, %41, %cst_25 {dimension_numbers = #tpu.dot_dimension_numbers<[1], [0], [0], [1], [0, 0, 1, 1], [], []>} : vector<2x32xbf16>, vector<32x128xbf16>, vector<2x128xf32> -> vector<2x128xf32>
    %158 = arith.addf %157, %15 : vector<2x128xf32>
    %159 = arith.negf %158 : vector<2x128xf32>
    %160 = math.exp %159 : vector<2x128xf32>
    %cst_26 = arith.constant 1.000000e+00 : f32
    %161 = vector.broadcast %cst_26 : f32 to vector<2x128xf32>
    %162 = arith.addf %161, %160 : vector<2x128xf32>
    %163 = arith.divf %161, %162 : vector<2x128xf32>
    %164 = vector.extract_strided_slice %163 {offsets = [0, 0], sizes = [2, 32], strides = [1, 1]} : vector<2x128xf32> to vector<2x32xf32>
    %165 = vector.extract_strided_slice %163 {offsets = [0, 32], sizes = [2, 32], strides = [1, 1]} : vector<2x128xf32> to vector<2x32xf32>
    %166 = vector.extract_strided_slice %163 {offsets = [0, 96], sizes = [2, 32], strides = [1, 1]} : vector<2x128xf32> to vector<2x32xf32>
    %167 = vector.extract_strided_slice %158 {offsets = [0, 64], sizes = [2, 32], strides = [1, 1]} : vector<2x128xf32> to vector<2x32xf32>
    %168 = math.tanh %167 : vector<2x32xf32>
    %169 = arith.mulf %165, %135 : vector<2x32xf32>
    %170 = arith.mulf %164, %168 : vector<2x32xf32>
    %171 = arith.addf %169, %170 : vector<2x32xf32>
    %172 = math.tanh %171 : vector<2x32xf32>
    %173 = arith.mulf %166, %172 : vector<2x32xf32>
    %174 = arith.truncf %155 : vector<2x32xf32> to vector<2x32xbf16>
    %cst_27 = arith.constant dense<0.000000e+00> : vector<2x128xf32>
    %175 = tpu.matmul %174, %43, %cst_27 {dimension_numbers = #tpu.dot_dimension_numbers<[1], [0], [0], [1], [0, 0, 1, 1], [], []>} : vector<2x32xbf16>, vector<32x128xbf16>, vector<2x128xf32> -> vector<2x128xf32>
    %176 = arith.addf %175, %31 : vector<2x128xf32>
    %177 = arith.negf %176 : vector<2x128xf32>
    %178 = math.exp %177 : vector<2x128xf32>
    %cst_28 = arith.constant 1.000000e+00 : f32
    %179 = vector.broadcast %cst_28 : f32 to vector<2x128xf32>
    %180 = arith.addf %179, %178 : vector<2x128xf32>
    %181 = arith.divf %179, %180 : vector<2x128xf32>
    %182 = vector.extract_strided_slice %181 {offsets = [0, 0], sizes = [2, 32], strides = [1, 1]} : vector<2x128xf32> to vector<2x32xf32>
    %183 = vector.extract_strided_slice %181 {offsets = [0, 32], sizes = [2, 32], strides = [1, 1]} : vector<2x128xf32> to vector<2x32xf32>
    %184 = vector.extract_strided_slice %181 {offsets = [0, 96], sizes = [2, 32], strides = [1, 1]} : vector<2x128xf32> to vector<2x32xf32>
    %185 = vector.extract_strided_slice %176 {offsets = [0, 64], sizes = [2, 32], strides = [1, 1]} : vector<2x128xf32> to vector<2x32xf32>
    %186 = math.tanh %185 : vector<2x32xf32>
    %187 = arith.mulf %183, %153 : vector<2x32xf32>
    %188 = arith.mulf %182, %186 : vector<2x32xf32>
    %189 = arith.addf %187, %188 : vector<2x32xf32>
    %190 = math.tanh %189 : vector<2x32xf32>
    %191 = arith.mulf %184, %190 : vector<2x32xf32>
    %192 = arith.truncf %173 : vector<2x32xf32> to vector<2x32xbf16>
    %cst_29 = arith.constant dense<0.000000e+00> : vector<2x128xf32>
    %193 = tpu.matmul %192, %41, %cst_29 {dimension_numbers = #tpu.dot_dimension_numbers<[1], [0], [0], [1], [0, 0, 1, 1], [], []>} : vector<2x32xbf16>, vector<32x128xbf16>, vector<2x128xf32> -> vector<2x128xf32>
    %194 = arith.addf %193, %17 : vector<2x128xf32>
    %195 = arith.negf %194 : vector<2x128xf32>
    %196 = math.exp %195 : vector<2x128xf32>
    %cst_30 = arith.constant 1.000000e+00 : f32
    %197 = vector.broadcast %cst_30 : f32 to vector<2x128xf32>
    %198 = arith.addf %197, %196 : vector<2x128xf32>
    %199 = arith.divf %197, %198 : vector<2x128xf32>
    %200 = vector.extract_strided_slice %199 {offsets = [0, 0], sizes = [2, 32], strides = [1, 1]} : vector<2x128xf32> to vector<2x32xf32>
    %201 = vector.extract_strided_slice %199 {offsets = [0, 32], sizes = [2, 32], strides = [1, 1]} : vector<2x128xf32> to vector<2x32xf32>
    %202 = vector.extract_strided_slice %199 {offsets = [0, 96], sizes = [2, 32], strides = [1, 1]} : vector<2x128xf32> to vector<2x32xf32>
    %203 = vector.extract_strided_slice %194 {offsets = [0, 64], sizes = [2, 32], strides = [1, 1]} : vector<2x128xf32> to vector<2x32xf32>
    %204 = math.tanh %203 : vector<2x32xf32>
    %205 = arith.mulf %201, %171 : vector<2x32xf32>
    %206 = arith.mulf %200, %204 : vector<2x32xf32>
    %207 = arith.addf %205, %206 : vector<2x32xf32>
    %208 = math.tanh %207 : vector<2x32xf32>
    %209 = arith.mulf %202, %208 : vector<2x32xf32>
    %210 = arith.truncf %191 : vector<2x32xf32> to vector<2x32xbf16>
    %cst_31 = arith.constant dense<0.000000e+00> : vector<2x128xf32>
    %211 = tpu.matmul %210, %43, %cst_31 {dimension_numbers = #tpu.dot_dimension_numbers<[1], [0], [0], [1], [0, 0, 1, 1], [], []>} : vector<2x32xbf16>, vector<32x128xbf16>, vector<2x128xf32> -> vector<2x128xf32>
    %212 = arith.addf %211, %33 : vector<2x128xf32>
    %213 = arith.negf %212 : vector<2x128xf32>
    %214 = math.exp %213 : vector<2x128xf32>
    %cst_32 = arith.constant 1.000000e+00 : f32
    %215 = vector.broadcast %cst_32 : f32 to vector<2x128xf32>
    %216 = arith.addf %215, %214 : vector<2x128xf32>
    %217 = arith.divf %215, %216 : vector<2x128xf32>
    %218 = vector.extract_strided_slice %217 {offsets = [0, 0], sizes = [2, 32], strides = [1, 1]} : vector<2x128xf32> to vector<2x32xf32>
    %219 = vector.extract_strided_slice %217 {offsets = [0, 32], sizes = [2, 32], strides = [1, 1]} : vector<2x128xf32> to vector<2x32xf32>
    %220 = vector.extract_strided_slice %217 {offsets = [0, 96], sizes = [2, 32], strides = [1, 1]} : vector<2x128xf32> to vector<2x32xf32>
    %221 = vector.extract_strided_slice %212 {offsets = [0, 64], sizes = [2, 32], strides = [1, 1]} : vector<2x128xf32> to vector<2x32xf32>
    %222 = math.tanh %221 : vector<2x32xf32>
    %223 = arith.mulf %219, %189 : vector<2x32xf32>
    %224 = arith.mulf %218, %222 : vector<2x32xf32>
    %225 = arith.addf %223, %224 : vector<2x32xf32>
    %226 = math.tanh %225 : vector<2x32xf32>
    %227 = arith.mulf %220, %226 : vector<2x32xf32>
    %228 = arith.truncf %209 : vector<2x32xf32> to vector<2x32xbf16>
    %cst_33 = arith.constant dense<0.000000e+00> : vector<2x128xf32>
    %229 = tpu.matmul %228, %41, %cst_33 {dimension_numbers = #tpu.dot_dimension_numbers<[1], [0], [0], [1], [0, 0, 1, 1], [], []>} : vector<2x32xbf16>, vector<32x128xbf16>, vector<2x128xf32> -> vector<2x128xf32>
    %230 = arith.addf %229, %19 : vector<2x128xf32>
    %231 = arith.negf %230 : vector<2x128xf32>
    %232 = math.exp %231 : vector<2x128xf32>
    %cst_34 = arith.constant 1.000000e+00 : f32
    %233 = vector.broadcast %cst_34 : f32 to vector<2x128xf32>
    %234 = arith.addf %233, %232 : vector<2x128xf32>
    %235 = arith.divf %233, %234 : vector<2x128xf32>
    %236 = vector.extract_strided_slice %235 {offsets = [0, 0], sizes = [2, 32], strides = [1, 1]} : vector<2x128xf32> to vector<2x32xf32>
    %237 = vector.extract_strided_slice %235 {offsets = [0, 32], sizes = [2, 32], strides = [1, 1]} : vector<2x128xf32> to vector<2x32xf32>
    %238 = vector.extract_strided_slice %235 {offsets = [0, 96], sizes = [2, 32], strides = [1, 1]} : vector<2x128xf32> to vector<2x32xf32>
    %239 = vector.extract_strided_slice %230 {offsets = [0, 64], sizes = [2, 32], strides = [1, 1]} : vector<2x128xf32> to vector<2x32xf32>
    %240 = math.tanh %239 : vector<2x32xf32>
    %241 = arith.mulf %237, %207 : vector<2x32xf32>
    %242 = arith.mulf %236, %240 : vector<2x32xf32>
    %243 = arith.addf %241, %242 : vector<2x32xf32>
    %244 = math.tanh %243 : vector<2x32xf32>
    %245 = arith.mulf %238, %244 : vector<2x32xf32>
    %246 = arith.truncf %227 : vector<2x32xf32> to vector<2x32xbf16>
    %cst_35 = arith.constant dense<0.000000e+00> : vector<2x128xf32>
    %247 = tpu.matmul %246, %43, %cst_35 {dimension_numbers = #tpu.dot_dimension_numbers<[1], [0], [0], [1], [0, 0, 1, 1], [], []>} : vector<2x32xbf16>, vector<32x128xbf16>, vector<2x128xf32> -> vector<2x128xf32>
    %248 = arith.addf %247, %35 : vector<2x128xf32>
    %249 = arith.negf %248 : vector<2x128xf32>
    %250 = math.exp %249 : vector<2x128xf32>
    %cst_36 = arith.constant 1.000000e+00 : f32
    %251 = vector.broadcast %cst_36 : f32 to vector<2x128xf32>
    %252 = arith.addf %251, %250 : vector<2x128xf32>
    %253 = arith.divf %251, %252 : vector<2x128xf32>
    %254 = vector.extract_strided_slice %253 {offsets = [0, 0], sizes = [2, 32], strides = [1, 1]} : vector<2x128xf32> to vector<2x32xf32>
    %255 = vector.extract_strided_slice %253 {offsets = [0, 32], sizes = [2, 32], strides = [1, 1]} : vector<2x128xf32> to vector<2x32xf32>
    %256 = vector.extract_strided_slice %253 {offsets = [0, 96], sizes = [2, 32], strides = [1, 1]} : vector<2x128xf32> to vector<2x32xf32>
    %257 = vector.extract_strided_slice %248 {offsets = [0, 64], sizes = [2, 32], strides = [1, 1]} : vector<2x128xf32> to vector<2x32xf32>
    %258 = math.tanh %257 : vector<2x32xf32>
    %259 = arith.mulf %255, %225 : vector<2x32xf32>
    %260 = arith.mulf %254, %258 : vector<2x32xf32>
    %261 = arith.addf %259, %260 : vector<2x32xf32>
    %262 = math.tanh %261 : vector<2x32xf32>
    %263 = arith.mulf %256, %262 : vector<2x32xf32>
    %264 = arith.truncf %245 : vector<2x32xf32> to vector<2x32xbf16>
    %cst_37 = arith.constant dense<0.000000e+00> : vector<2x128xf32>
    %265 = tpu.matmul %264, %41, %cst_37 {dimension_numbers = #tpu.dot_dimension_numbers<[1], [0], [0], [1], [0, 0, 1, 1], [], []>} : vector<2x32xbf16>, vector<32x128xbf16>, vector<2x128xf32> -> vector<2x128xf32>
    %266 = arith.addf %265, %21 : vector<2x128xf32>
    %267 = arith.negf %266 : vector<2x128xf32>
    %268 = math.exp %267 : vector<2x128xf32>
    %cst_38 = arith.constant 1.000000e+00 : f32
    %269 = vector.broadcast %cst_38 : f32 to vector<2x128xf32>
    %270 = arith.addf %269, %268 : vector<2x128xf32>
    %271 = arith.divf %269, %270 : vector<2x128xf32>
    %272 = vector.extract_strided_slice %271 {offsets = [0, 0], sizes = [2, 32], strides = [1, 1]} : vector<2x128xf32> to vector<2x32xf32>
    %273 = vector.extract_strided_slice %271 {offsets = [0, 32], sizes = [2, 32], strides = [1, 1]} : vector<2x128xf32> to vector<2x32xf32>
    %274 = vector.extract_strided_slice %271 {offsets = [0, 96], sizes = [2, 32], strides = [1, 1]} : vector<2x128xf32> to vector<2x32xf32>
    %275 = vector.extract_strided_slice %266 {offsets = [0, 64], sizes = [2, 32], strides = [1, 1]} : vector<2x128xf32> to vector<2x32xf32>
    %276 = math.tanh %275 : vector<2x32xf32>
    %277 = arith.mulf %273, %243 : vector<2x32xf32>
    %278 = arith.mulf %272, %276 : vector<2x32xf32>
    %279 = arith.addf %277, %278 : vector<2x32xf32>
    %280 = math.tanh %279 : vector<2x32xf32>
    %281 = arith.mulf %274, %280 : vector<2x32xf32>
    %282 = arith.truncf %263 : vector<2x32xf32> to vector<2x32xbf16>
    %cst_39 = arith.constant dense<0.000000e+00> : vector<2x128xf32>
    %283 = tpu.matmul %282, %43, %cst_39 {dimension_numbers = #tpu.dot_dimension_numbers<[1], [0], [0], [1], [0, 0, 1, 1], [], []>} : vector<2x32xbf16>, vector<32x128xbf16>, vector<2x128xf32> -> vector<2x128xf32>
    %284 = arith.addf %283, %37 : vector<2x128xf32>
    %285 = arith.negf %284 : vector<2x128xf32>
    %286 = math.exp %285 : vector<2x128xf32>
    %cst_40 = arith.constant 1.000000e+00 : f32
    %287 = vector.broadcast %cst_40 : f32 to vector<2x128xf32>
    %288 = arith.addf %287, %286 : vector<2x128xf32>
    %289 = arith.divf %287, %288 : vector<2x128xf32>
    %290 = vector.extract_strided_slice %289 {offsets = [0, 0], sizes = [2, 32], strides = [1, 1]} : vector<2x128xf32> to vector<2x32xf32>
    %291 = vector.extract_strided_slice %289 {offsets = [0, 32], sizes = [2, 32], strides = [1, 1]} : vector<2x128xf32> to vector<2x32xf32>
    %292 = vector.extract_strided_slice %289 {offsets = [0, 96], sizes = [2, 32], strides = [1, 1]} : vector<2x128xf32> to vector<2x32xf32>
    %293 = vector.extract_strided_slice %284 {offsets = [0, 64], sizes = [2, 32], strides = [1, 1]} : vector<2x128xf32> to vector<2x32xf32>
    %294 = math.tanh %293 : vector<2x32xf32>
    %295 = arith.mulf %291, %261 : vector<2x32xf32>
    %296 = arith.mulf %290, %294 : vector<2x32xf32>
    %297 = arith.addf %295, %296 : vector<2x32xf32>
    %298 = math.tanh %297 : vector<2x32xf32>
    %299 = arith.mulf %292, %298 : vector<2x32xf32>
    %300 = arith.truncf %281 : vector<2x32xf32> to vector<2x32xbf16>
    %cst_41 = arith.constant dense<0.000000e+00> : vector<2x128xf32>
    %301 = tpu.matmul %300, %41, %cst_41 {dimension_numbers = #tpu.dot_dimension_numbers<[1], [0], [0], [1], [0, 0, 1, 1], [], []>} : vector<2x32xbf16>, vector<32x128xbf16>, vector<2x128xf32> -> vector<2x128xf32>
    %302 = arith.addf %301, %23 : vector<2x128xf32>
    %303 = arith.negf %302 : vector<2x128xf32>
    %304 = math.exp %303 : vector<2x128xf32>
    %cst_42 = arith.constant 1.000000e+00 : f32
    %305 = vector.broadcast %cst_42 : f32 to vector<2x128xf32>
    %306 = arith.addf %305, %304 : vector<2x128xf32>
    %307 = arith.divf %305, %306 : vector<2x128xf32>
    %308 = vector.extract_strided_slice %307 {offsets = [0, 0], sizes = [2, 32], strides = [1, 1]} : vector<2x128xf32> to vector<2x32xf32>
    %309 = vector.extract_strided_slice %307 {offsets = [0, 32], sizes = [2, 32], strides = [1, 1]} : vector<2x128xf32> to vector<2x32xf32>
    %310 = vector.extract_strided_slice %307 {offsets = [0, 96], sizes = [2, 32], strides = [1, 1]} : vector<2x128xf32> to vector<2x32xf32>
    %311 = vector.extract_strided_slice %302 {offsets = [0, 64], sizes = [2, 32], strides = [1, 1]} : vector<2x128xf32> to vector<2x32xf32>
    %312 = math.tanh %311 : vector<2x32xf32>
    %313 = arith.mulf %309, %279 : vector<2x32xf32>
    %314 = arith.mulf %308, %312 : vector<2x32xf32>
    %315 = arith.addf %313, %314 : vector<2x32xf32>
    %316 = math.tanh %315 : vector<2x32xf32>
    %317 = arith.mulf %310, %316 : vector<2x32xf32>
    %318 = arith.truncf %299 : vector<2x32xf32> to vector<2x32xbf16>
    %cst_43 = arith.constant dense<0.000000e+00> : vector<2x128xf32>
    %319 = tpu.matmul %318, %43, %cst_43 {dimension_numbers = #tpu.dot_dimension_numbers<[1], [0], [0], [1], [0, 0, 1, 1], [], []>} : vector<2x32xbf16>, vector<32x128xbf16>, vector<2x128xf32> -> vector<2x128xf32>
    %320 = arith.addf %319, %39 : vector<2x128xf32>
    %321 = arith.negf %320 : vector<2x128xf32>
    %322 = math.exp %321 : vector<2x128xf32>
    %cst_44 = arith.constant 1.000000e+00 : f32
    %323 = vector.broadcast %cst_44 : f32 to vector<2x128xf32>
    %324 = arith.addf %323, %322 : vector<2x128xf32>
    %325 = arith.divf %323, %324 : vector<2x128xf32>
    %326 = vector.extract_strided_slice %325 {offsets = [0, 0], sizes = [2, 32], strides = [1, 1]} : vector<2x128xf32> to vector<2x32xf32>
    %327 = vector.extract_strided_slice %325 {offsets = [0, 32], sizes = [2, 32], strides = [1, 1]} : vector<2x128xf32> to vector<2x32xf32>
    %328 = vector.extract_strided_slice %325 {offsets = [0, 96], sizes = [2, 32], strides = [1, 1]} : vector<2x128xf32> to vector<2x32xf32>
    %329 = vector.extract_strided_slice %320 {offsets = [0, 64], sizes = [2, 32], strides = [1, 1]} : vector<2x128xf32> to vector<2x32xf32>
    %330 = math.tanh %329 : vector<2x32xf32>
    %331 = arith.mulf %327, %297 : vector<2x32xf32>
    %332 = arith.mulf %326, %330 : vector<2x32xf32>
    %333 = arith.addf %331, %332 : vector<2x32xf32>
    %334 = math.tanh %333 : vector<2x32xf32>
    %335 = arith.mulf %328, %334 : vector<2x32xf32>
    %336 = vector.shape_cast %65 : vector<2x32xf32> to vector<2x1x32xf32>
    %337 = vector.shape_cast %101 : vector<2x32xf32> to vector<2x1x32xf32>
    %338 = vector.shape_cast %137 : vector<2x32xf32> to vector<2x1x32xf32>
    %339 = vector.shape_cast %173 : vector<2x32xf32> to vector<2x1x32xf32>
    %340 = vector.shape_cast %209 : vector<2x32xf32> to vector<2x1x32xf32>
    %341 = vector.shape_cast %245 : vector<2x32xf32> to vector<2x1x32xf32>
    %342 = vector.shape_cast %281 : vector<2x32xf32> to vector<2x1x32xf32>
    %343 = vector.shape_cast %317 : vector<2x32xf32> to vector<2x1x32xf32>
    %344 = tpu.concatenate %336, %337, %338, %339, %340, %341, %342, %343 in 1 : vector<2x1x32xf32>, vector<2x1x32xf32>, vector<2x1x32xf32>, vector<2x1x32xf32>, vector<2x1x32xf32>, vector<2x1x32xf32>, vector<2x1x32xf32>, vector<2x1x32xf32> -> vector<2x8x32xf32>
    %345 = vector.shape_cast %335 : vector<2x32xf32> to vector<2x1x32xf32>
    %346 = vector.shape_cast %299 : vector<2x32xf32> to vector<2x1x32xf32>
    %347 = vector.shape_cast %263 : vector<2x32xf32> to vector<2x1x32xf32>
    %348 = vector.shape_cast %227 : vector<2x32xf32> to vector<2x1x32xf32>
    %349 = vector.shape_cast %191 : vector<2x32xf32> to vector<2x1x32xf32>
    %350 = vector.shape_cast %155 : vector<2x32xf32> to vector<2x1x32xf32>
    %351 = vector.shape_cast %119 : vector<2x32xf32> to vector<2x1x32xf32>
    %352 = vector.shape_cast %83 : vector<2x32xf32> to vector<2x1x32xf32>
    %353 = tpu.concatenate %345, %346, %347, %348, %349, %350, %351, %352 in 1 : vector<2x1x32xf32>, vector<2x1x32xf32>, vector<2x1x32xf32>, vector<2x1x32xf32>, vector<2x1x32xf32>, vector<2x1x32xf32>, vector<2x1x32xf32>, vector<2x1x32xf32> -> vector<2x8x32xf32>
    %354 = tpu.concatenate %344, %353 in 2 : vector<2x8x32xf32>, vector<2x8x32xf32> -> vector<2x8x64xf32>
    "tpu.trace_start"() <{level = 10 : i32, message = "btd,bsd->bts"}> : () -> ()
    %cst_45 = arith.constant dense<0.000000e+00> : vector<2x8x8xf32>
    %355 = tpu.matmul %354, %354, %cst_45 {dimension_numbers = #tpu.dot_dimension_numbers<[2], [2], [1], [1], [0, 0, 0, 1, 1, 1], [0], [0]>} : vector<2x8x64xf32>, vector<2x8x64xf32>, vector<2x8x8xf32> -> vector<2x8x8xf32>
    "tpu.trace_stop"() : () -> ()
    %cst_46 = arith.constant 1.250000e-01 : f32
    %356 = vector.broadcast %cst_46 : f32 to vector<2x8x8xf32>
    %357 = arith.mulf %355, %356 : vector<2x8x8xf32>
    %cst_47 = arith.constant dense<0xFF800000> : vector<2x8xf32>
    %358 = vector.multi_reduction <maximumf>, %357, %cst_47 [2] : vector<2x8x8xf32> to vector<2x8xf32>
    %cst_48 = arith.constant 0xFF800000 : f32
    %359 = vector.broadcast %cst_48 : f32 to vector<2x8xf32>
    %360 = arith.maximumf %359, %358 : vector<2x8xf32>
    %361 = vector.shape_cast %360 : vector<2x8xf32> to vector<2x8x1xf32>
    %362 = vector.broadcast %361 : vector<2x8x1xf32> to vector<2x8x8xf32>
    %363 = arith.subf %357, %362 : vector<2x8x8xf32>
    %364 = math.exp %363 : vector<2x8x8xf32>
    %cst_49 = arith.constant dense<0.000000e+00> : vector<2x8xf32>
    %365 = vector.multi_reduction <add>, %364, %cst_49 [2] : vector<2x8x8xf32> to vector<2x8xf32>
    %366 = vector.shape_cast %365 : vector<2x8xf32> to vector<2x8x1xf32>
    %367 = vector.broadcast %366 : vector<2x8x1xf32> to vector<2x8x8xf32>
    %368 = arith.divf %364, %367 : vector<2x8x8xf32>
    %c0_50 = arith.constant 0 : index
    %c0_51 = arith.constant 0 : index
    %c0_52 = arith.constant 0 : index
    %369 = vector.load %arg7[%c0_50, %c0_51, %c0_52] : memref<2x8x8xf32, #tpu.memory_space<vmem>>, vector<2x8x8xf32>
    tpu.vector_store %arg7[%c0_50, %c0_51, %c0_52], %368 {strides = array<i32>} : memref<2x8x8xf32, #tpu.memory_space<vmem>>, vector<2x8x8xf32>,
    %370 = vector.extract_strided_slice %368 {offsets = [0, 7, 0], sizes = [2, 1, 8], strides = [1, 1, 1]} : vector<2x8x8xf32> to vector<2x1x8xf32>
    "tpu.trace_start"() <{level = 10 : i32, message = "bqs,bsd->bqd"}> : () -> ()
    %cst_53 = arith.constant dense<0.000000e+00> : vector<2x1x64xf32>
    %371 = tpu.matmul %370, %354, %cst_53 {dimension_numbers = #tpu.dot_dimension_numbers<[2], [1], [1], [2], [0, 0, 0, 1, 1, 2], [0], [0]>} : vector<2x1x8xf32>, vector<2x8x64xf32>, vector<2x1x64xf32> -> vector<2x1x64xf32>
    "tpu.trace_stop"() : () -> ()
    %372 = vector.shape_cast %371 : vector<2x1x64xf32> to vector<2x64xf32>
    %c0_54 = arith.constant 0 : index
    %c0_55 = arith.constant 0 : index
    %373 = vector.load %arg4[%c0_54, %c0_55] : memref<64x2xf32, #tpu.memory_space<vmem>>, vector<64x2xf32>
    %cst_56 = arith.constant dense<0.000000e+00> : vector<2x2xf32>
    %374 = tpu.matmul %372, %373, %cst_56 {dimension_numbers = #tpu.dot_dimension_numbers<[1], [0], [0], [1], [0, 0, 1, 1], [], []>} : vector<2x64xf32>, vector<64x2xf32>, vector<2x2xf32> -> vector<2x2xf32>
    %c0_57 = arith.constant 0 : index
    %c0_58 = arith.constant 0 : index
    %375 = vector.load %arg5[%c0_57, %c0_58] : memref<1x2xf32, #tpu.memory_space<vmem>>, vector<1x2xf32>
    %376 = vector.broadcast %375 : vector<1x2xf32> to vector<2x2xf32>
    %377 = arith.addf %374, %376 : vector<2x2xf32>
    %cst_59 = arith.constant dense<0xFF800000> : vector<2xf32>
    %378 = vector.multi_reduction <maximumf>, %377, %cst_59 [1] : vector<2x2xf32> to vector<2xf32>
    %cst_60 = arith.constant 0xFF800000 : f32
    %379 = vector.broadcast %cst_60 : f32 to vector<2xf32>
    %380 = arith.maximumf %379, %378 : vector<2xf32>
    %381 = vector.shape_cast %380 : vector<2xf32> to vector<2x1xf32>
    %382 = vector.broadcast %381 : vector<2x1xf32> to vector<2x2xf32>
    %383 = arith.subf %377, %382 : vector<2x2xf32>
    %384 = math.exp %383 : vector<2x2xf32>
    %cst_61 = arith.constant dense<0.000000e+00> : vector<2xf32>
    %385 = vector.multi_reduction <add>, %384, %cst_61 [1] : vector<2x2xf32> to vector<2xf32>
    %386 = vector.shape_cast %385 : vector<2xf32> to vector<2x1xf32>
    %387 = vector.broadcast %386 : vector<2x1xf32> to vector<2x2xf32>
    %388 = arith.divf %384, %387 : vector<2x2xf32>
    %c0_62 = arith.constant 0 : index
    %c0_63 = arith.constant 0 : index
    %389 = vector.load %arg6[%c0_62, %c0_63] : memref<2x2xf32, #tpu.memory_space<vmem>>, vector<2x2xf32>
    tpu.vector_store %arg6[%c0_62, %c0_63], %388 {strides = array<i32>} : memref<2x2xf32, #tpu.memory_space<vmem>>, vector<2x2xf32>,
    return
  }
}

</mosaic_0001>

<llo_original>
// kernel: order_network_forward.1
$region0: #{order_network_forward.1}
  #allocation0 [shape = 'u32[]', space=smem, size = 0x4, offset = 0x4, fixed_abs, tag = 'smem constant byte address 0x4 - core index']
  #allocation1 [shape = 'u32[144,128]{1,0:T(1,128)}', space=vmem, size = 0x12000, scoped, tag = 'internal scratch']
  %s0 = inlined_call_operand.vmem [shape: f32[2,8,4], index: 0, kind: input, shape index: {}]
  %s1 = inlined_call_operand.vmem [shape: f32[4,256], index: 1, kind: input, shape index: {}]
  %s2 = inlined_call_operand.vmem [shape: f32[64,128], index: 2, kind: input, shape index: {}]
  %s3 = inlined_call_operand.vmem [shape: f32[1,256], index: 3, kind: input, shape index: {}]
  %s4 = inlined_call_operand.vmem [shape: f32[64,2], index: 4, kind: input, shape index: {}]
  %s5 = inlined_call_operand.vmem [shape: f32[1,2], index: 5, kind: input, shape index: {}]
  %s6 = inlined_call_operand.vmem [shape: f32[2,2], index: 6, kind: output, shape index: {0}]
  %s7 = inlined_call_operand.hbm [shape: f32[2,8,8], index: 7, kind: output, shape index: {1}]
  %8 = xla_tuple %s6, %s7
  %s9 = sld [smem:[#allocation0]]
  $region42: #{order_network_forward.1} parent=0
    _
  %s11 = ssub.s32 1, %s9
  %s12 = scalar_select 0, %s11, %s9
  $region1: #{order_network_forward.1} parent=0
    #allocation2 [shape = 'u8[8192]{0}', space=vmem, size = 0x2000, scoped, tag = 'output window, operand 1, single buffered']
    #allocation3 [shape = 's32[1]{0}', space=sflag, size = 0x4, scoped, tag = 'scoped memory for order_network_forward.1']
    %13 = vsyncpa [#allocation3], 0
    // Predicated region
    $region2: #{order_network_forward.1} parent=1 // pred_check
      _
    $region3: #{order_network_forward.1} parent=1 // pred_check_branch
      %15 = sbr.rel (0) target = $region5
    $region4: #{order_network_forward.1} parent=1 // pred_region
      _
    $region5: #{order_network_forward.1} parent=1 // pred_fallthru
      _
    // Predicated region
    $region6: #{order_network_forward.1} parent=1 // pred_check
      _
    $region7: #{order_network_forward.1} parent=1 // pred_check_branch
      %17 = sbr.rel (0) target = $region9
    $region8: #{order_network_forward.1} parent=1 // pred_region
      _
    $region9: #{order_network_forward.1} parent=1 // pred_fallthru
      _
    // Predicated region
    $region10: #{order_network_forward.1} parent=1 // pred_check
      _
    $region11: #{order_network_forward.1} parent=1 // pred_check_branch
      %19 = sbr.rel (0) target = $region13
    $region12: #{order_network_forward.1} parent=1 // pred_region
      _
    $region13: #{order_network_forward.1} parent=1 // pred_fallthru
      _
    // Predicated region
    $region14: #{order_network_forward.1} parent=1 // pred_check
      _
    $region15: #{order_network_forward.1} parent=1 // pred_check_branch
      %21 = sbr.rel (0) target = $region17
    $region16: #{order_network_forward.1} parent=1 // pred_region
      _
    $region17: #{order_network_forward.1} parent=1 // pred_fallthru
      _
    // Predicated region
    $region18: #{order_network_forward.1} parent=1 // pred_check
      _
    $region19: #{order_network_forward.1} parent=1 // pred_check_branch
      %23 = sbr.rel (0) target = $region21
    $region20: #{order_network_forward.1} parent=1 // pred_region
      _
    $region21: #{order_network_forward.1} parent=1 // pred_fallthru
      _
    // Predicated region
    $region22: #{order_network_forward.1} parent=1 // pred_check
      _
    $region23: #{order_network_forward.1} parent=1 // pred_check_branch
      %25 = sbr.rel (0) target = $region25
    $region24: #{order_network_forward.1} parent=1 // pred_region
      _
    $region25: #{order_network_forward.1} parent=1 // pred_fallthru
      _
    %v27 = vld [vmem:[%s0] sm:$0xff]
    %v28 = vld [vmem:[%s0 + $0x8] sm:$0xff]
    %v29 = vld [vmem:[%s1] sm:$0xff]
    %v30 = vld [vmem:[%s3] sm:$0x3]
    %v32 = vlaneseq
    %v33 = vshrl.u32 %v32, 7
    %v34 = vsub.s32 0, %v33
    %v35 = vrot.slane %v30, %v34
    %v36 = vlaneseq
    %v37 = vshrl.u32 %v36, 7
    %v38 = vsub.s32 1, %v37
    %v39 = vrot.slane %v30, %v38
    %v43 = vcombine.high %v29, %v29
    %vm44 = vcmask 31744
    %v46 = vsel %vm44, %v27, 0
    %v49 = vsel %vm44, %v28, 0
    %vm51 = vcmask 1043456
    %v52 = vsel %vm51, %v29, 0
    %v54 = vsel %vm51, %v43, 0
    %56 = vmatprep.subr.mxu0 0.0
    %57 = vmatpush1.msra.mxu0 0.0
    %58 = vmatprep.subr.mxu0 0.0
    %59 = vmatpush1.msra.mxu0 0.0
    %60 = vmatprep.subr.mxu0 0.0
    %61 = vmatpush1.msra.mxu0 0.0
    %62 = vmatprep.subr.mxu0 0.0
    %63 = vmatpush1.msra.mxu0 0.0
    %64 = vmatprep.subr.mxu0 0.0
    %65 = vmatpush1.msra.mxu0 0.0
    %66 = vmatprep.subr.mxu0 0.0
    %67 = vmatpush1.msra.mxu0 0.0
    %68 = vmatprep.subr.mxu0 0.0
    %69 = vmatpush1.msra.mxu0 0.0
    %70 = vmatprep.subr.mxu0 0.0
    %71 = vmatpush1.msra.mxu0 0.0
    %72 = vmatprep.subr.mxu0 0.0
    %73 = vmatpush1.msra.mxu0 0.0
    %74 = vmatprep.subr.mxu0 0.0
    %75 = vmatpush1.msra.mxu0 0.0
    %76 = vmatprep.subr.mxu0 0.0
    %77 = vmatpush1.msra.mxu0 0.0
    %78 = vmatprep.subr.mxu0 0.0
    %79 = vmatpush1.msra.mxu0 0.0
    %80 = vmatprep.subr.mxu0 0.0
    %81 = vmatpush1.msra.mxu0 0.0
    %82 = vmatprep.subr.mxu0 0.0
    %83 = vmatpush1.msra.mxu0 0.0
    %84 = vmatprep.subr.mxu0 0.0
    %85 = vmatpush1.msra.mxu0 0.0
    %86 = vmatprep.subr.mxu0 %v54
    %87 = vmatpush1.msra.mxu0 %v52
    %88 = vmatprep.subr.mxu0 0.0
    %89 = vmatpush2.msra.mxu0 0.0
    %90 = vmatprep.subr.mxu0 0.0
    %91 = vmatpush2.msra.mxu0 0.0
    %92 = vmatprep.subr.mxu0 0.0
    %93 = vmatpush2.msra.mxu0 0.0
    %94 = vmatprep.subr.mxu0 0.0
    %95 = vmatpush2.msra.mxu0 0.0
    %96 = vmatprep.subr.mxu0 0.0
    %97 = vmatpush2.msra.mxu0 0.0
    %98 = vmatprep.subr.mxu0 0.0
    %99 = vmatpush2.msra.mxu0 0.0
    %100 = vmatprep.subr.mxu0 0.0
    %101 = vmatpush2.msra.mxu0 0.0
    %102 = vmatprep.subr.mxu0 0.0
    %103 = vmatpush2.msra.mxu0 0.0
    %104 = vmatprep.subr.mxu0 0.0
    %105 = vmatpush2.msra.mxu0 0.0
    %106 = vmatprep.subr.mxu0 0.0
    %107 = vmatpush2.msra.mxu0 0.0
    %108 = vmatprep.subr.mxu0 0.0
    %109 = vmatpush2.msra.mxu0 0.0
    %110 = vmatprep.subr.mxu0 0.0
    %111 = vmatpush2.msra.mxu0 0.0
    %112 = vmatprep.subr.mxu0 0.0
    %113 = vmatpush2.msra.mxu0 0.0
    %114 = vmatprep.subr.mxu0 0.0
    %115 = vmatpush2.msra.mxu0 0.0
    %116 = vmatprep.subr.mxu0 0.0
    %117 = vmatpush2.msra.mxu0 0.0
    %118 = vmatprep.subr.mxu0 0.0
    %119 = vmatpush2.msra.mxu0 0.0
    %120 = vmatprep.mubr.f32.mxu0 0.0
    %121 = vmatmul.mubr.f32.gmra.mxu0 %v46
    %v122 = vpop.f32.mrf.mxu0
    %v123 = vadd.f32 %v35, %v122
    %v124 = vpop.f32.mrf.mxu0
    %v125 = vadd.f32 %v39, %v124
    %126 = vmatprep.mubr.f32.mxu0 0.0
    %127 = vmatmul.mubr.f32.gmra.mxu0 %v49
    %v128 = vpop.f32.mrf.mxu0
    %v129 = vadd.f32 %v35, %v128
    %v130 = vpop.f32.mrf.mxu0
    %v131 = vadd.f32 %v39, %v130
    %132 = vdwg.mxu0
    %v133 = vld [vmem:[%s2] sm:$0xff]
    %v134 = vld [vmem:[%s2 + $0x8] sm:$0xff]
    %v135 = vld [vmem:[%s2 + $0x10] sm:$0xff]
    %v136 = vld [vmem:[%s2 + $0x18] sm:$0xff]
    %v137 = vpack.c.bf16 %v134, %v133
    %v138 = vpack.c.bf16 %v136, %v135
    %v139 = vld [vmem:[%s2 + $0x20] sm:$0xff]
    %v140 = vld [vmem:[%s2 + $0x28] sm:$0xff]
    %v141 = vld [vmem:[%s2 + $0x30] sm:$0xff]
    %v142 = vld [vmem:[%s2 + $0x38] sm:$0xff]
    %v143 = vpack.c.bf16 %v140, %v139
    %v144 = vpack.c.bf16 %v142, %v141
    %v147 = vrot.slane %v129, 7
    %vm148 = vcmask 1041409
    %v149 = vsel %vm148, %v147, %v123
    %vm151 = vcmask 261120
    %v153 = vsel %vm151, 0, 0
    %155 = vmatprep.subr.bf16.mxu0 0
    %156 = vmatpush1.bf16.msra.mxu0 0
    %157 = vmatprep.subr.bf16.mxu0 0
    %158 = vmatpush1.bf16.msra.mxu0 0
    %159 = vmatprep.subr.bf16.mxu0 0
    %160 = vmatpush1.bf16.msra.mxu0 0
    %161 = vmatprep.subr.bf16.mxu0 0
    %162 = vmatpush1.bf16.msra.mxu0 0
    %163 = vmatprep.subr.bf16.mxu0 0
    %164 = vmatpush1.bf16.msra.mxu0 0
    %165 = vmatprep.subr.bf16.mxu0 0
    %166 = vmatpush1.bf16.msra.mxu0 0
    %167 = vmatprep.subr.bf16.mxu0 0
    %168 = vmatpush1.bf16.msra.mxu0 %v138
    %169 = vmatprep.subr.bf16.mxu0 0
    %170 = vmatpush1.bf16.msra.mxu0 %v137
    %171 = vmatprep.subr.bf16.mxu0 0
    %172 = vmatpush2.bf16.msra.mxu0 0
    %173 = vmatprep.subr.bf16.mxu0 0
    %174 = vmatpush2.bf16.msra.mxu0 0
    %175 = vmatprep.subr.bf16.mxu0 0
    %176 = vmatpush2.bf16.msra.mxu0 0
    %177 = vmatprep.subr.bf16.mxu0 0
    %178 = vmatpush2.bf16.msra.mxu0 0
    %179 = vmatprep.subr.bf16.mxu0 0
    %180 = vmatpush2.bf16.msra.mxu0 0
    %181 = vmatprep.subr.bf16.mxu0 0
    %182 = vmatpush2.bf16.msra.mxu0 0
    %183 = vmatprep.subr.bf16.mxu0 0
    %184 = vmatpush2.bf16.msra.mxu0 0
    %185 = vmatprep.subr.bf16.mxu0 0
    %186 = vmatpush2.bf16.msra.mxu0 0
    %187 = vmatprep.mubr.bf16.mxu0 0
    %188 = vmatmul.mubr.bf16.gmra.mxu0 %v153
    %v189 = vpop.f32.mrf.mxu0
    %v190 = vadd.f32 %v149, %v189
    %v191 = vpop.f32.mrf.mxu0
    %v192 = vpop.f32.mrf.mxu0
    %v193 = vpop.f32.mrf.mxu0
    %194 = vdwg.mxu0
    %v195 = vxor.u32 %v190, 2147483648
    %v196 = vmul.f32 %v195, 1.442695
    %v197 = vpow.pop %v196
    %v198 = vadd.f32 %v197, 1.0
    %v199 = vrcp.pop %v198
    %v200 = vmul.f32 1.0, %v199
    %v201 = vtanh.pop %v190
    %v202 = vmul.f32 %v200, 0.0
    %204 = vrot.lane.b32.xlu0 %v201, 64
    %v205 = vpop.permute.xlu0 %204
    %v207 = vmul.f32 %v200, %v205
    %209 = vrot.lane.b32.xlu0 %v207, 32
    %v210 = vpop.permute.xlu0 %209
    %v212 = vadd.f32 %v202, %v210
    %v213 = vtanh.pop %v212
    %215 = vrot.lane.b32.xlu0 %v213, 64
    %v216 = vpop.permute.xlu0 %215
    %v218 = vmul.f32 %v200, %v216
    %v221 = vrot.slane %v125, 7
    %v222 = vrot.slane %v131, 6
    %v223 = vsel %vm148, %v222, %v221
    %225 = vmatprep.subr.bf16.mxu0 0
    %226 = vmatpush1.bf16.msra.mxu0 0
    %227 = vmatprep.subr.bf16.mxu0 0
    %228 = vmatpush1.bf16.msra.mxu0 0
    %229 = vmatprep.subr.bf16.mxu0 0
    %230 = vmatpush1.bf16.msra.mxu0 0
    %231 = vmatprep.subr.bf16.mxu0 0
    %232 = vmatpush1.bf16.msra.mxu0 0
    %233 = vmatprep.subr.bf16.mxu0 0
    %234 = vmatpush1.bf16.msra.mxu0 0
    %235 = vmatprep.subr.bf16.mxu0 0
    %236 = vmatpush1.bf16.msra.mxu0 0
    %237 = vmatprep.subr.bf16.mxu0 0
    %238 = vmatpush1.bf16.msra.mxu0 %v144
    %239 = vmatprep.subr.bf16.mxu0 0
    %240 = vmatpush1.bf16.msra.mxu0 %v143
    %241 = vmatprep.subr.bf16.mxu0 0
    %242 = vmatpush2.bf16.msra.mxu0 0
    %243 = vmatprep.subr.bf16.mxu0 0
    %244 = vmatpush2.bf16.msra.mxu0 0
    %245 = vmatprep.subr.bf16.mxu0 0
    %246 = vmatpush2.bf16.msra.mxu0 0
    %247 = vmatprep.subr.bf16.mxu0 0
    %248 = vmatpush2.bf16.msra.mxu0 0
    %249 = vmatprep.subr.bf16.mxu0 0
    %250 = vmatpush2.bf16.msra.mxu0 0
    %251 = vmatprep.subr.bf16.mxu0 0
    %252 = vmatpush2.bf16.msra.mxu0 0
    %253 = vmatprep.subr.bf16.mxu0 0
    %254 = vmatpush2.bf16.msra.mxu0 0
    %255 = vmatprep.subr.bf16.mxu0 0
    %256 = vmatpush2.bf16.msra.mxu0 0
    %257 = vmatprep.mubr.bf16.mxu0 0
    %258 = vmatmul.mubr.bf16.gmra.mxu0 %v153
    %v259 = vpop.f32.mrf.mxu0
    %v260 = vadd.f32 %v223, %v259
    %v261 = vpop.f32.mrf.mxu0
    %v262 = vpop.f32.mrf.mxu0
    %v263 = vpop.f32.mrf.mxu0
    %264 = vdwg.mxu0
    %v265 = vxor.u32 %v260, 2147483648
    %v266 = vmul.f32 %v265, 1.442695
    %v267 = vpow.pop %v266
    %v268 = vadd.f32 %v267, 1.0
    %v269 = vrcp.pop %v268
    %v270 = vmul.f32 1.0, %v269
    %v271 = vtanh.pop %v260
    %v272 = vmul.f32 %v270, 0.0
    %274 = vrot.lane.b32.xlu0 %v271, 64
    %v275 = vpop.permute.xlu0 %274
    %v277 = vmul.f32 %v270, %v275
    %279 = vrot.lane.b32.xlu0 %v277, 32
    %v280 = vpop.permute.xlu0 %279
    %v282 = vadd.f32 %v272, %v280
    %v283 = vtanh.pop %v282
    %285 = vrot.lane.b32.xlu0 %v283, 64
    %v286 = vpop.permute.xlu0 %285
    %v288 = vmul.f32 %v270, %v286
    %v289 = vpack.c.bf16 %v218, %v218
    %291 = vrot.lane.b32.xlu0 %v289, 32
    %v292 = vpop.permute.xlu0 %291
    %v293 = vrot.slane %v123, 1
    %v294 = vsel %vm148, %v129, %v293
    %v297 = vsel %vm151, %v292, 0
    %299 = vmatprep.subr.bf16.mxu0 0
    %300 = vmatpush1.bf16.msra.mxu0 0
    %301 = vmatprep.subr.bf16.mxu0 0
    %302 = vmatpush1.bf16.msra.mxu0 0
    %303 = vmatprep.subr.bf16.mxu0 0
    %304 = vmatpush1.bf16.msra.mxu0 0
    %305 = vmatprep.subr.bf16.mxu0 0
    %306 = vmatpush1.bf16.msra.mxu0 0
    %307 = vmatprep.subr.bf16.mxu0 0
    %308 = vmatpush1.bf16.msra.mxu0 0
    %309 = vmatprep.subr.bf16.mxu0 0
    %310 = vmatpush1.bf16.msra.mxu0 0
    %311 = vmatprep.subr.bf16.mxu0 0
    %312 = vmatpush1.bf16.msra.mxu0 %v138
    %313 = vmatprep.subr.bf16.mxu0 0
    %314 = vmatpush1.bf16.msra.mxu0 %v137
    %315 = vmatprep.subr.bf16.mxu0 0
    %316 = vmatpush2.bf16.msra.mxu0 0
    %317 = vmatprep.subr.bf16.mxu0 0
    %318 = vmatpush2.bf16.msra.mxu0 0
    %319 = vmatprep.subr.bf16.mxu0 0
    %320 = vmatpush2.bf16.msra.mxu0 0
    %321 = vmatprep.subr.bf16.mxu0 0
    %322 = vmatpush2.bf16.msra.mxu0 0
    %323 = vmatprep.subr.bf16.mxu0 0
    %324 = vmatpush2.bf16.msra.mxu0 0
    %325 = vmatprep.subr.bf16.mxu0 0
    %326 = vmatpush2.bf16.msra.mxu0 0
    %327 = vmatprep.subr.bf16.mxu0 0
    %328 = vmatpush2.bf16.msra.mxu0 0
    %329 = vmatprep.subr.bf16.mxu0 0
    %330 = vmatpush2.bf16.msra.mxu0 0
    %331 = vmatprep.mubr.bf16.mxu0 0
    %332 = vmatmul.mubr.bf16.gmra.mxu0 %v297
    %v333 = vpop.f32.mrf.mxu0
    %v334 = vadd.f32 %v294, %v333
    %v335 = vpop.f32.mrf.mxu0
    %v336 = vpop.f32.mrf.mxu0
    %v337 = vpop.f32.mrf.mxu0
    %338 = vdwg.mxu0
    %v339 = vxor.u32 %v334, 2147483648
    %v340 = vmul.f32 %v339, 1.442695
    %v341 = vpow.pop %v340
    %v342 = vadd.f32 %v341, 1.0
    %v343 = vrcp.pop %v342
    %v344 = vmul.f32 1.0, %v343
    %v345 = vtanh.pop %v334
    %v346 = vmul.f32 %v344, %v212
    %348 = vrot.lane.b32.xlu0 %v345, 64
    %v349 = vpop.permute.xlu0 %348
    %v351 = vmul.f32 %v344, %v349
    %353 = vrot.lane.b32.xlu0 %v351, 32
    %v354 = vpop.permute.xlu0 %353
    %v356 = vadd.f32 %v346, %v354
    %v357 = vtanh.pop %v356
    %359 = vrot.lane.b32.xlu0 %v357, 64
    %v360 = vpop.permute.xlu0 %359
    %v362 = vmul.f32 %v344, %v360
    %v363 = vpack.c.bf16 %v288, %v288
    %365 = vrot.lane.b32.xlu0 %v363, 32
    %v366 = vpop.permute.xlu0 %365
    %v367 = vrot.slane %v125, 6
    %v368 = vrot.slane %v131, 5
    %v369 = vsel %vm148, %v368, %v367
    %v372 = vsel %vm151, %v366, 0
    %374 = vmatprep.subr.bf16.mxu0 0
    %375 = vmatpush1.bf16.msra.mxu0 0
    %376 = vmatprep.subr.bf16.mxu0 0
    %377 = vmatpush1.bf16.msra.mxu0 0
    %378 = vmatprep.subr.bf16.mxu0 0
    %379 = vmatpush1.bf16.msra.mxu0 0
    %380 = vmatprep.subr.bf16.mxu0 0
    %381 = vmatpush1.bf16.msra.mxu0 0
    %382 = vmatprep.subr.bf16.mxu0 0
    %383 = vmatpush1.bf16.msra.mxu0 0
    %384 = vmatprep.subr.bf16.mxu0 0
    %385 = vmatpush1.bf16.msra.mxu0 0
    %386 = vmatprep.subr.bf16.mxu0 0
    %387 = vmatpush1.bf16.msra.mxu0 %v144
    %388 = vmatprep.subr.bf16.mxu0 0
    %389 = vmatpush1.bf16.msra.mxu0 %v143
    %390 = vmatprep.subr.bf16.mxu0 0
    %391 = vmatpush2.bf16.msra.mxu0 0
    %392 = vmatprep.subr.bf16.mxu0 0
    %393 = vmatpush2.bf16.msra.mxu0 0
    %394 = vmatprep.subr.bf16.mxu0 0
    %395 = vmatpush2.bf16.msra.mxu0 0
    %396 = vmatprep.subr.bf16.mxu0 0
    %397 = vmatpush2.bf16.msra.mxu0 0
    %398 = vmatprep.subr.bf16.mxu0 0
    %399 = vmatpush2.bf16.msra.mxu0 0
    %400 = vmatprep.subr.bf16.mxu0 0
    %401 = vmatpush2.bf16.msra.mxu0 0
    %402 = vmatprep.subr.bf16.mxu0 0
    %403 = vmatpush2.bf16.msra.mxu0 0
    %404 = vmatprep.subr.bf16.mxu0 0
    %405 = vmatpush2.bf16.msra.mxu0 0
    %406 = vmatprep.mubr.bf16.mxu0 0
    %407 = vmatmul.mubr.bf16.gmra.mxu0 %v372
    %v408 = vpop.f32.mrf.mxu0
    %v409 = vadd.f32 %v369, %v408
    %v410 = vpop.f32.mrf.mxu0
    %v411 = vpop.f32.mrf.mxu0
    %v412 = vpop.f32.mrf.mxu0
    %413 = vdwg.mxu0
    %v414 = vxor.u32 %v409, 2147483648
    %v415 = vmul.f32 %v414, 1.442695
    %v416 = vpow.pop %v415
    %v417 = vadd.f32 %v416, 1.0
    %v418 = vrcp.pop %v417
    %v419 = vmul.f32 1.0, %v418
    %v420 = vtanh.pop %v409
    %v421 = vmul.f32 %v419, %v282
    %423 = vrot.lane.b32.xlu0 %v420, 64
    %v424 = vpop.permute.xlu0 %423
    %v426 = vmul.f32 %v419, %v424
    %428 = vrot.lane.b32.xlu0 %v426, 32
    %v429 = vpop.permute.xlu0 %428
    %v431 = vadd.f32 %v421, %v429
    %v432 = vtanh.pop %v431
    %434 = vrot.lane.b32.xlu0 %v432, 64
    %v435 = vpop.permute.xlu0 %434
    %v437 = vmul.f32 %v419, %v435
    %v438 = vpack.c.bf16 %v362, %v362
    %440 = vrot.lane.b32.xlu0 %v438, 32
    %v441 = vpop.permute.xlu0 %440
    %v442 = vrot.slane %v123, 2
    %v443 = vrot.slane %v129, 1
    %v444 = vsel %vm148, %v443, %v442
    %v447 = vsel %vm151, %v441, 0
    %449 = vmatprep.subr.bf16.mxu0 0
    %450 = vmatpush1.bf16.msra.mxu0 0
    %451 = vmatprep.subr.bf16.mxu0 0
    %452 = vmatpush1.bf16.msra.mxu0 0
    %453 = vmatprep.subr.bf16.mxu0 0
    %454 = vmatpush1.bf16.msra.mxu0 0
    %455 = vmatprep.subr.bf16.mxu0 0
    %456 = vmatpush1.bf16.msra.mxu0 0
    %457 = vmatprep.subr.bf16.mxu0 0
    %458 = vmatpush1.bf16.msra.mxu0 0
    %459 = vmatprep.subr.bf16.mxu0 0
    %460 = vmatpush1.bf16.msra.mxu0 0
    %461 = vmatprep.subr.bf16.mxu0 0
    %462 = vmatpush1.bf16.msra.mxu0 %v138
    %463 = vmatprep.subr.bf16.mxu0 0
    %464 = vmatpush1.bf16.msra.mxu0 %v137
    %465 = vmatprep.subr.bf16.mxu0 0
    %466 = vmatpush2.bf16.msra.mxu0 0
    %467 = vmatprep.subr.bf16.mxu0 0
    %468 = vmatpush2.bf16.msra.mxu0 0
    %469 = vmatprep.subr.bf16.mxu0 0
    %470 = vmatpush2.bf16.msra.mxu0 0
    %471 = vmatprep.subr.bf16.mxu0 0
    %472 = vmatpush2.bf16.msra.mxu0 0
    %473 = vmatprep.subr.bf16.mxu0 0
    %474 = vmatpush2.bf16.msra.mxu0 0
    %475 = vmatprep.subr.bf16.mxu0 0
    %476 = vmatpush2.bf16.msra.mxu0 0
    %477 = vmatprep.subr.bf16.mxu0 0
    %478 = vmatpush2.bf16.msra.mxu0 0
    %479 = vmatprep.subr.bf16.mxu0 0
    %480 = vmatpush2.bf16.msra.mxu0 0
    %481 = vmatprep.mubr.bf16.mxu0 0
    %482 = vmatmul.mubr.bf16.gmra.mxu0 %v447
    %v483 = vpop.f32.mrf.mxu0
    %v484 = vadd.f32 %v444, %v483
    %v485 = vpop.f32.mrf.mxu0
    %v486 = vpop.f32.mrf.mxu0
    %v487 = vpop.f32.mrf.mxu0
    %488 = vdwg.mxu0
    %v489 = vxor.u32 %v484, 2147483648
    %v490 = vmul.f32 %v489, 1.442695
    %v491 = vpow.pop %v490
    %v492 = vadd.f32 %v491, 1.0
    %v493 = vrcp.pop %v492
    %v494 = vmul.f32 1.0, %v493
    %v495 = vtanh.pop %v484
    %v496 = vmul.f32 %v494, %v356
    %498 = vrot.lane.b32.xlu0 %v495, 64
    %v499 = vpop.permute.xlu0 %498
    %v501 = vmul.f32 %v494, %v499
    %503 = vrot.lane.b32.xlu0 %v501, 32
    %v504 = vpop.permute.xlu0 %503
    %v506 = vadd.f32 %v496, %v504
    %v507 = vtanh.pop %v506
    %509 = vrot.lane.b32.xlu0 %v507, 64
    %v510 = vpop.permute.xlu0 %509
    %v512 = vmul.f32 %v494, %v510
    %v513 = vpack.c.bf16 %v437, %v437
    %515 = vrot.lane.b32.xlu0 %v513, 32
    %v516 = vpop.permute.xlu0 %515
    %v517 = vrot.slane %v125, 5
    %v518 = vrot.slane %v131, 4
    %v519 = vsel %vm148, %v518, %v517
    %v522 = vsel %vm151, %v516, 0
    %524 = vmatprep.subr.bf16.mxu0 0
    %525 = vmatpush1.bf16.msra.mxu0 0
    %526 = vmatprep.subr.bf16.mxu0 0
    %527 = vmatpush1.bf16.msra.mxu0 0
    %528 = vmatprep.subr.bf16.mxu0 0
    %529 = vmatpush1.bf16.msra.mxu0 0
    %530 = vmatprep.subr.bf16.mxu0 0
    %531 = vmatpush1.bf16.msra.mxu0 0
    %532 = vmatprep.subr.bf16.mxu0 0
    %533 = vmatpush1.bf16.msra.mxu0 0
    %534 = vmatprep.subr.bf16.mxu0 0
    %535 = vmatpush1.bf16.msra.mxu0 0
    %536 = vmatprep.subr.bf16.mxu0 0
    %537 = vmatpush1.bf16.msra.mxu0 %v144
    %538 = vmatprep.subr.bf16.mxu0 0
    %539 = vmatpush1.bf16.msra.mxu0 %v143
    %540 = vmatprep.subr.bf16.mxu0 0
    %541 = vmatpush2.bf16.msra.mxu0 0
    %542 = vmatprep.subr.bf16.mxu0 0
    %543 = vmatpush2.bf16.msra.mxu0 0
    %544 = vmatprep.subr.bf16.mxu0 0
    %545 = vmatpush2.bf16.msra.mxu0 0
    %546 = vmatprep.subr.bf16.mxu0 0
    %547 = vmatpush2.bf16.msra.mxu0 0
    %548 = vmatprep.subr.bf16.mxu0 0
    %549 = vmatpush2.bf16.msra.mxu0 0
    %550 = vmatprep.subr.bf16.mxu0 0
    %551 = vmatpush2.bf16.msra.mxu0 0
    %552 = vmatprep.subr.bf16.mxu0 0
    %553 = vmatpush2.bf16.msra.mxu0 0
    %554 = vmatprep.subr.bf16.mxu0 0
    %555 = vmatpush2.bf16.msra.mxu0 0
    %556 = vmatprep.mubr.bf16.mxu0 0
    %557 = vmatmul.mubr.bf16.gmra.mxu0 %v522
    %v558 = vpop.f32.mrf.mxu0
    %v559 = vadd.f32 %v519, %v558
    %v560 = vpop.f32.mrf.mxu0
    %v561 = vpop.f32.mrf.mxu0
    %v562 = vpop.f32.mrf.mxu0
    %563 = vdwg.mxu0
    %v564 = vxor.u32 %v559, 2147483648
    %v565 = vmul.f32 %v564, 1.442695
    %v566 = vpow.pop %v565
    %v567 = vadd.f32 %v566, 1.0
    %v568 = vrcp.pop %v567
    %v569 = vmul.f32 1.0, %v568
    %v570 = vtanh.pop %v559
    %v571 = vmul.f32 %v569, %v431
    %573 = vrot.lane.b32.xlu0 %v570, 64
    %v574 = vpop.permute.xlu0 %573
    %v576 = vmul.f32 %v569, %v574
    %578 = vrot.lane.b32.xlu0 %v576, 32
    %v579 = vpop.permute.xlu0 %578
    %v581 = vadd.f32 %v571, %v579
    %v582 = vtanh.pop %v581
    %584 = vrot.lane.b32.xlu0 %v582, 64
    %v585 = vpop.permute.xlu0 %584
    %v587 = vmul.f32 %v569, %v585
    %v588 = vpack.c.bf16 %v512, %v512
    %590 = vrot.lane.b32.xlu0 %v588, 32
    %v591 = vpop.permute.xlu0 %590
    %v592 = vrot.slane %v123, 3
    %v593 = vrot.slane %v129, 2
    %v594 = vsel %vm148, %v593, %v592
    %v597 = vsel %vm151, %v591, 0
    %599 = vmatprep.subr.bf16.mxu0 0
    %600 = vmatpush1.bf16.msra.mxu0 0
    %601 = vmatprep.subr.bf16.mxu0 0
    %602 = vmatpush1.bf16.msra.mxu0 0
    %603 = vmatprep.subr.bf16.mxu0 0
    %604 = vmatpush1.bf16.msra.mxu0 0
    %605 = vmatprep.subr.bf16.mxu0 0
    %606 = vmatpush1.bf16.msra.mxu0 0
    %607 = vmatprep.subr.bf16.mxu0 0
    %608 = vmatpush1.bf16.msra.mxu0 0
    %609 = vmatprep.subr.bf16.mxu0 0
    %610 = vmatpush1.bf16.msra.mxu0 0
    %611 = vmatprep.subr.bf16.mxu0 0
    %612 = vmatpush1.bf16.msra.mxu0 %v138
    %613 = vmatprep.subr.bf16.mxu0 0
    %614 = vmatpush1.bf16.msra.mxu0 %v137
    %615 = vmatprep.subr.bf16.mxu0 0
    %616 = vmatpush2.bf16.msra.mxu0 0
    %617 = vmatprep.subr.bf16.mxu0 0
    %618 = vmatpush2.bf16.msra.mxu0 0
    %619 = vmatprep.subr.bf16.mxu0 0
    %620 = vmatpush2.bf16.msra.mxu0 0
    %621 = vmatprep.subr.bf16.mxu0 0
    %622 = vmatpush2.bf16.msra.mxu0 0
    %623 = vmatprep.subr.bf16.mxu0 0
    %624 = vmatpush2.bf16.msra.mxu0 0
    %625 = vmatprep.subr.bf16.mxu0 0
    %626 = vmatpush2.bf16.msra.mxu0 0
    %627 = vmatprep.subr.bf16.mxu0 0
    %628 = vmatpush2.bf16.msra.mxu0 0
    %629 = vmatprep.subr.bf16.mxu0 0
    %630 = vmatpush2.bf16.msra.mxu0 0
    %631 = vmatprep.mubr.bf16.mxu0 0
    %632 = vmatmul.mubr.bf16.gmra.mxu0 %v597
    %v633 = vpop.f32.mrf.mxu0
    %v634 = vadd.f32 %v594, %v633
    %v635 = vpop.f32.mrf.mxu0
    %v636 = vpop.f32.mrf.mxu0
    %v637 = vpop.f32.mrf.mxu0
    %638 = vdwg.mxu0
    %v639 = vxor.u32 %v634, 2147483648
    %v640 = vmul.f32 %v639, 1.442695
    %v641 = vpow.pop %v640
    %v642 = vadd.f32 %v641, 1.0
    %v643 = vrcp.pop %v642
    %v644 = vmul.f32 1.0, %v643
    %v645 = vtanh.pop %v634
    %v646 = vmul.f32 %v644, %v506
    %648 = vrot.lane.b32.xlu0 %v645, 64
    %v649 = vpop.permute.xlu0 %648
    %v651 = vmul.f32 %v644, %v649
    %653 = vrot.lane.b32.xlu0 %v651, 32
    %v654 = vpop.permute.xlu0 %653
    %v656 = vadd.f32 %v646, %v654
    %v657 = vtanh.pop %v656
    %659 = vrot.lane.b32.xlu0 %v657, 64
    %v660 = vpop.permute.xlu0 %659
    %v662 = vmul.f32 %v644, %v660
    %v663 = vpack.c.bf16 %v587, %v587
    %665 = vrot.lane.b32.xlu0 %v663, 32
    %v666 = vpop.permute.xlu0 %665
    %v667 = vrot.slane %v125, 4
    %v668 = vrot.slane %v131, 3
    %v669 = vsel %vm148, %v668, %v667
    %v672 = vsel %vm151, %v666, 0
    %674 = vmatprep.subr.bf16.mxu0 0
    %675 = vmatpush1.bf16.msra.mxu0 0
    %676 = vmatprep.subr.bf16.mxu0 0
    %677 = vmatpush1.bf16.msra.mxu0 0
    %678 = vmatprep.subr.bf16.mxu0 0
    %679 = vmatpush1.bf16.msra.mxu0 0
    %680 = vmatprep.subr.bf16.mxu0 0
    %681 = vmatpush1.bf16.msra.mxu0 0
    %682 = vmatprep.subr.bf16.mxu0 0
    %683 = vmatpush1.bf16.msra.mxu0 0
    %684 = vmatprep.subr.bf16.mxu0 0
    %685 = vmatpush1.bf16.msra.mxu0 0
    %686 = vmatprep.subr.bf16.mxu0 0
    %687 = vmatpush1.bf16.msra.mxu0 %v144
    %688 = vmatprep.subr.bf16.mxu0 0
    %689 = vmatpush1.bf16.msra.mxu0 %v143
    %690 = vmatprep.subr.bf16.mxu0 0
    %691 = vmatpush2.bf16.msra.mxu0 0
    %692 = vmatprep.subr.bf16.mxu0 0
    %693 = vmatpush2.bf16.msra.mxu0 0
    %694 = vmatprep.subr.bf16.mxu0 0
    %695 = vmatpush2.bf16.msra.mxu0 0
    %696 = vmatprep.subr.bf16.mxu0 0
    %697 = vmatpush2.bf16.msra.mxu0 0
    %698 = vmatprep.subr.bf16.mxu0 0
    %699 = vmatpush2.bf16.msra.mxu0 0
    %700 = vmatprep.subr.bf16.mxu0 0
    %701 = vmatpush2.bf16.msra.mxu0 0
    %702 = vmatprep.subr.bf16.mxu0 0
    %703 = vmatpush2.bf16.msra.mxu0 0
    %704 = vmatprep.subr.bf16.mxu0 0
    %705 = vmatpush2.bf16.msra.mxu0 0
    %706 = vmatprep.mubr.bf16.mxu0 0
    %707 = vmatmul.mubr.bf16.gmra.mxu0 %v672
    %v708 = vpop.f32.mrf.mxu0
    %v709 = vadd.f32 %v669, %v708
    %v710 = vpop.f32.mrf.mxu0
    %v711 = vpop.f32.mrf.mxu0
    %v712 = vpop.f32.mrf.mxu0
    %713 = vdwg.mxu0
    %v714 = vxor.u32 %v709, 2147483648
    %v715 = vmul.f32 %v714, 1.442695
    %v716 = vpow.pop %v715
    %v717 = vadd.f32 %v716, 1.0
    %v718 = vrcp.pop %v717
    %v719 = vmul.f32 1.0, %v718
    %v720 = vtanh.pop %v709
    %v721 = vmul.f32 %v719, %v581
    %723 = vrot.lane.b32.xlu0 %v720, 64
    %v724 = vpop.permute.xlu0 %723
    %v726 = vmul.f32 %v719, %v724
    %728 = vrot.lane.b32.xlu0 %v726, 32
    %v729 = vpop.permute.xlu0 %728
    %v731 = vadd.f32 %v721, %v729
    %v732 = vtanh.pop %v731
    %734 = vrot.lane.b32.xlu0 %v732, 64
    %v735 = vpop.permute.xlu0 %734
    %v737 = vmul.f32 %v719, %v735
    %v738 = vpack.c.bf16 %v662, %v662
    %740 = vrot.lane.b32.xlu0 %v738, 32
    %v741 = vpop.permute.xlu0 %740
    %v742 = vrot.slane %v123, 4
    %v743 = vrot.slane %v129, 3
    %v744 = vsel %vm148, %v743, %v742
    %v747 = vsel %vm151, %v741, 0
    %749 = vmatprep.subr.bf16.mxu0 0
    %750 = vmatpush1.bf16.msra.mxu0 0
    %751 = vmatprep.subr.bf16.mxu0 0
    %752 = vmatpush1.bf16.msra.mxu0 0
    %753 = vmatprep.subr.bf16.mxu0 0
    %754 = vmatpush1.bf16.msra.mxu0 0
    %755 = vmatprep.subr.bf16.mxu0 0
    %756 = vmatpush1.bf16.msra.mxu0 0
    %757 = vmatprep.subr.bf16.mxu0 0
    %758 = vmatpush1.bf16.msra.mxu0 0
    %759 = vmatprep.subr.bf16.mxu0 0
    %760 = vmatpush1.bf16.msra.mxu0 0
    %761 = vmatprep.subr.bf16.mxu0 0
    %762 = vmatpush1.bf16.msra.mxu0 %v138
    %763 = vmatprep.subr.bf16.mxu0 0
    %764 = vmatpush1.bf16.msra.mxu0 %v137
    %765 = vmatprep.subr.bf16.mxu0 0
    %766 = vmatpush2.bf16.msra.mxu0 0
    %767 = vmatprep.subr.bf16.mxu0 0
    %768 = vmatpush2.bf16.msra.mxu0 0
    %769 = vmatprep.subr.bf16.mxu0 0
    %770 = vmatpush2.bf16.msra.mxu0 0
    %771 = vmatprep.subr.bf16.mxu0 0
    %772 = vmatpush2.bf16.msra.mxu0 0
    %773 = vmatprep.subr.bf16.mxu0 0
    %774 = vmatpush2.bf16.msra.mxu0 0
    %775 = vmatprep.subr.bf16.mxu0 0
    %776 = vmatpush2.bf16.msra.mxu0 0
    %777 = vmatprep.subr.bf16.mxu0 0
    %778 = vmatpush2.bf16.msra.mxu0 0
    %779 = vmatprep.subr.bf16.mxu0 0
    %780 = vmatpush2.bf16.msra.mxu0 0
    %781 = vmatprep.mubr.bf16.mxu0 0
    %782 = vmatmul.mubr.bf16.gmra.mxu0 %v747
    %v783 = vpop.f32.mrf.mxu0
    %v784 = vadd.f32 %v744, %v783
    %v785 = vpop.f32.mrf.mxu0
    %v786 = vpop.f32.mrf.mxu0
    %v787 = vpop.f32.mrf.mxu0
    %788 = vdwg.mxu0
    %v789 = vxor.u32 %v784, 2147483648
    %v790 = vmul.f32 %v789, 1.442695
    %v791 = vpow.pop %v790
    %v792 = vadd.f32 %v791, 1.0
    %v793 = vrcp.pop %v792
    %v794 = vmul.f32 1.0, %v793
    %v795 = vtanh.pop %v784
    %v796 = vmul.f32 %v794, %v656
    %798 = vrot.lane.b32.xlu0 %v795, 64
    %v799 = vpop.permute.xlu0 %798
    %v801 = vmul.f32 %v794, %v799
    %803 = vrot.lane.b32.xlu0 %v801, 32
    %v804 = vpop.permute.xlu0 %803
    %v806 = vadd.f32 %v796, %v804
    %v807 = vtanh.pop %v806
    %809 = vrot.lane.b32.xlu0 %v807, 64
    %v810 = vpop.permute.xlu0 %809
    %v812 = vmul.f32 %v794, %v810
    %v813 = vpack.c.bf16 %v737, %v737
    %815 = vrot.lane.b32.xlu0 %v813, 32
    %v816 = vpop.permute.xlu0 %815
    %v817 = vrot.slane %v125, 3
    %v818 = vrot.slane %v131, 2
    %v819 = vsel %vm148, %v818, %v817
    %v822 = vsel %vm151, %v816, 0
    %824 = vmatprep.subr.bf16.mxu0 0
    %825 = vmatpush1.bf16.msra.mxu0 0
    %826 = vmatprep.subr.bf16.mxu0 0
    %827 = vmatpush1.bf16.msra.mxu0 0
    %828 = vmatprep.subr.bf16.mxu0 0
    %829 = vmatpush1.bf16.msra.mxu0 0
    %830 = vmatprep.subr.bf16.mxu0 0
    %831 = vmatpush1.bf16.msra.mxu0 0
    %832 = vmatprep.subr.bf16.mxu0 0
    %833 = vmatpush1.bf16.msra.mxu0 0
    %834 = vmatprep.subr.bf16.mxu0 0
    %835 = vmatpush1.bf16.msra.mxu0 0
    %836 = vmatprep.subr.bf16.mxu0 0
    %837 = vmatpush1.bf16.msra.mxu0 %v144
    %838 = vmatprep.subr.bf16.mxu0 0
    %839 = vmatpush1.bf16.msra.mxu0 %v143
    %840 = vmatprep.subr.bf16.mxu0 0
    %841 = vmatpush2.bf16.msra.mxu0 0
    %842 = vmatprep.subr.bf16.mxu0 0
    %843 = vmatpush2.bf16.msra.mxu0 0
    %844 = vmatprep.subr.bf16.mxu0 0
    %845 = vmatpush2.bf16.msra.mxu0 0
    %846 = vmatprep.subr.bf16.mxu0 0
    %847 = vmatpush2.bf16.msra.mxu0 0
    %848 = vmatprep.subr.bf16.mxu0 0
    %849 = vmatpush2.bf16.msra.mxu0 0
    %850 = vmatprep.subr.bf16.mxu0 0
    %851 = vmatpush2.bf16.msra.mxu0 0
    %852 = vmatprep.subr.bf16.mxu0 0
    %853 = vmatpush2.bf16.msra.mxu0 0
    %854 = vmatprep.subr.bf16.mxu0 0
    %855 = vmatpush2.bf16.msra.mxu0 0
    %856 = vmatprep.mubr.bf16.mxu0 0
    %857 = vmatmul.mubr.bf16.gmra.mxu0 %v822
    %v858 = vpop.f32.mrf.mxu0
    %v859 = vadd.f32 %v819, %v858
    %v860 = vpop.f32.mrf.mxu0
    %v861 = vpop.f32.mrf.mxu0
    %v862 = vpop.f32.mrf.mxu0
    %863 = vdwg.mxu0
    %v864 = vxor.u32 %v859, 2147483648
    %v865 = vmul.f32 %v864, 1.442695
    %v866 = vpow.pop %v865
    %v867 = vadd.f32 %v866, 1.0
    %v868 = vrcp.pop %v867
    %v869 = vmul.f32 1.0, %v868
    %v870 = vtanh.pop %v859
    %v871 = vmul.f32 %v869, %v731
    %873 = vrot.lane.b32.xlu0 %v870, 64
    %v874 = vpop.permute.xlu0 %873
    %v876 = vmul.f32 %v869, %v874
    %878 = vrot.lane.b32.xlu0 %v876, 32
    %v879 = vpop.permute.xlu0 %878
    %v881 = vadd.f32 %v871, %v879
    %v882 = vtanh.pop %v881
    %884 = vrot.lane.b32.xlu0 %v882, 64
    %v885 = vpop.permute.xlu0 %884
    %v887 = vmul.f32 %v869, %v885
    %v888 = vpack.c.bf16 %v812, %v812
    %890 = vrot.lane.b32.xlu0 %v888, 32
    %v891 = vpop.permute.xlu0 %890
    %v892 = vrot.slane %v123, 5
    %v893 = vrot.slane %v129, 4
    %v894 = vsel %vm148, %v893, %v892
    %v897 = vsel %vm151, %v891, 0
    %899 = vmatprep.subr.bf16.mxu0 0
    %900 = vmatpush1.bf16.msra.mxu0 0
    %901 = vmatprep.subr.bf16.mxu0 0
    %902 = vmatpush1.bf16.msra.mxu0 0
    %903 = vmatprep.subr.bf16.mxu0 0
    %904 = vmatpush1.bf16.msra.mxu0 0
    %905 = vmatprep.subr.bf16.mxu0 0
    %906 = vmatpush1.bf16.msra.mxu0 0
    %907 = vmatprep.subr.bf16.mxu0 0
    %908 = vmatpush1.bf16.msra.mxu0 0
    %909 = vmatprep.subr.bf16.mxu0 0
    %910 = vmatpush1.bf16.msra.mxu0 0
    %911 = vmatprep.subr.bf16.mxu0 0
    %912 = vmatpush1.bf16.msra.mxu0 %v138
    %913 = vmatprep.subr.bf16.mxu0 0
    %914 = vmatpush1.bf16.msra.mxu0 %v137
    %915 = vmatprep.subr.bf16.mxu0 0
    %916 = vmatpush2.bf16.msra.mxu0 0
    %917 = vmatprep.subr.bf16.mxu0 0
    %918 = vmatpush2.bf16.msra.mxu0 0
    %919 = vmatprep.subr.bf16.mxu0 0
    %920 = vmatpush2.bf16.msra.mxu0 0
    %921 = vmatprep.subr.bf16.mxu0 0
    %922 = vmatpush2.bf16.msra.mxu0 0
    %923 = vmatprep.subr.bf16.mxu0 0
    %924 = vmatpush2.bf16.msra.mxu0 0
    %925 = vmatprep.subr.bf16.mxu0 0
    %926 = vmatpush2.bf16.msra.mxu0 0
    %927 = vmatprep.subr.bf16.mxu0 0
    %928 = vmatpush2.bf16.msra.mxu0 0
    %929 = vmatprep.subr.bf16.mxu0 0
    %930 = vmatpush2.bf16.msra.mxu0 0
    %931 = vmatprep.mubr.bf16.mxu0 0
    %932 = vmatmul.mubr.bf16.gmra.mxu0 %v897
    %v933 = vpop.f32.mrf.mxu0
    %v934 = vadd.f32 %v894, %v933
    %v935 = vpop.f32.mrf.mxu0
    %v936 = vpop.f32.mrf.mxu0
    %v937 = vpop.f32.mrf.mxu0
    %938 = vdwg.mxu0
    %v939 = vxor.u32 %v934, 2147483648
    %v940 = vmul.f32 %v939, 1.442695
    %v941 = vpow.pop %v940
    %v942 = vadd.f32 %v941, 1.0
    %v943 = vrcp.pop %v942
    %v944 = vmul.f32 1.0, %v943
    %v945 = vtanh.pop %v934
    %v946 = vmul.f32 %v944, %v806
    %948 = vrot.lane.b32.xlu0 %v945, 64
    %v949 = vpop.permute.xlu0 %948
    %v951 = vmul.f32 %v944, %v949
    %953 = vrot.lane.b32.xlu0 %v951, 32
    %v954 = vpop.permute.xlu0 %953
    %v956 = vadd.f32 %v946, %v954
    %v957 = vtanh.pop %v956
    %959 = vrot.lane.b32.xlu0 %v957, 64
    %v960 = vpop.permute.xlu0 %959
    %v962 = vmul.f32 %v944, %v960
    %v963 = vpack.c.bf16 %v887, %v887
    %965 = vrot.lane.b32.xlu0 %v963, 32
    %v966 = vpop.permute.xlu0 %965
    %v967 = vrot.slane %v125, 2
    %v968 = vrot.slane %v131, 1
    %v969 = vsel %vm148, %v968, %v967
    %v972 = vsel %vm151, %v966, 0
    %974 = vmatprep.subr.bf16.mxu0 0
    %975 = vmatpush1.bf16.msra.mxu0 0
    %976 = vmatprep.subr.bf16.mxu0 0
    %977 = vmatpush1.bf16.msra.mxu0 0
    %978 = vmatprep.subr.bf16.mxu0 0
    %979 = vmatpush1.bf16.msra.mxu0 0
    %980 = vmatprep.subr.bf16.mxu0 0
    %981 = vmatpush1.bf16.msra.mxu0 0
    %982 = vmatprep.subr.bf16.mxu0 0
    %983 = vmatpush1.bf16.msra.mxu0 0
    %984 = vmatprep.subr.bf16.mxu0 0
    %985 = vmatpush1.bf16.msra.mxu0 0
    %986 = vmatprep.subr.bf16.mxu0 0
    %987 = vmatpush1.bf16.msra.mxu0 %v144
    %988 = vmatprep.subr.bf16.mxu0 0
    %989 = vmatpush1.bf16.msra.mxu0 %v143
    %990 = vmatprep.subr.bf16.mxu0 0
    %991 = vmatpush2.bf16.msra.mxu0 0
    %992 = vmatprep.subr.bf16.mxu0 0
    %993 = vmatpush2.bf16.msra.mxu0 0
    %994 = vmatprep.subr.bf16.mxu0 0
    %995 = vmatpush2.bf16.msra.mxu0 0
    %996 = vmatprep.subr.bf16.mxu0 0
    %997 = vmatpush2.bf16.msra.mxu0 0
    %998 = vmatprep.subr.bf16.mxu0 0
    %999 = vmatpush2.bf16.msra.mxu0 0
    %1000 = vmatprep.subr.bf16.mxu0 0
    %1001 = vmatpush2.bf16.msra.mxu0 0
    %1002 = vmatprep.subr.bf16.mxu0 0
    %1003 = vmatpush2.bf16.msra.mxu0 0
    %1004 = vmatprep.subr.bf16.mxu0 0
    %1005 = vmatpush2.bf16.msra.mxu0 0
    %1006 = vmatprep.mubr.bf16.mxu0 0
    %1007 = vmatmul.mubr.bf16.gmra.mxu0 %v972
    %v1008 = vpop.f32.mrf.mxu0
    %v1009 = vadd.f32 %v969, %v1008
    %v1010 = vpop.f32.mrf.mxu0
    %v1011 = vpop.f32.mrf.mxu0
    %v1012 = vpop.f32.mrf.mxu0
    %1013 = vdwg.mxu0
    %v1014 = vxor.u32 %v1009, 2147483648
    %v1015 = vmul.f32 %v1014, 1.442695
    %v1016 = vpow.pop %v1015
    %v1017 = vadd.f32 %v1016, 1.0
    %v1018 = vrcp.pop %v1017
    %v1019 = vmul.f32 1.0, %v1018
    %v1020 = vtanh.pop %v1009
    %v1021 = vmul.f32 %v1019, %v881
    %1023 = vrot.lane.b32.xlu0 %v1020, 64
    %v1024 = vpop.permute.xlu0 %1023
    %v1026 = vmul.f32 %v1019, %v1024
    %1028 = vrot.lane.b32.xlu0 %v1026, 32
    %v1029 = vpop.permute.xlu0 %1028
    %v1031 = vadd.f32 %v1021, %v1029
    %v1032 = vtanh.pop %v1031
    %1034 = vrot.lane.b32.xlu0 %v1032, 64
    %v1035 = vpop.permute.xlu0 %1034
    %v1037 = vmul.f32 %v1019, %v1035
    %v1038 = vpack.c.bf16 %v962, %v962
    %1040 = vrot.lane.b32.xlu0 %v1038, 32
    %v1041 = vpop.permute.xlu0 %1040
    %v1042 = vrot.slane %v123, 6
    %v1043 = vrot.slane %v129, 5
    %v1044 = vsel %vm148, %v1043, %v1042
    %v1047 = vsel %vm151, %v1041, 0
    %1049 = vmatprep.subr.bf16.mxu0 0
    %1050 = vmatpush1.bf16.msra.mxu0 0
    %1051 = vmatprep.subr.bf16.mxu0 0
    %1052 = vmatpush1.bf16.msra.mxu0 0
    %1053 = vmatprep.subr.bf16.mxu0 0
    %1054 = vmatpush1.bf16.msra.mxu0 0
    %1055 = vmatprep.subr.bf16.mxu0 0
    %1056 = vmatpush1.bf16.msra.mxu0 0
    %1057 = vmatprep.subr.bf16.mxu0 0
    %1058 = vmatpush1.bf16.msra.mxu0 0
    %1059 = vmatprep.subr.bf16.mxu0 0
    %1060 = vmatpush1.bf16.msra.mxu0 0
    %1061 = vmatprep.subr.bf16.mxu0 0
    %1062 = vmatpush1.bf16.msra.mxu0 %v138
    %1063 = vmatprep.subr.bf16.mxu0 0
    %1064 = vmatpush1.bf16.msra.mxu0 %v137
    %1065 = vmatprep.subr.bf16.mxu0 0
    %1066 = vmatpush2.bf16.msra.mxu0 0
    %1067 = vmatprep.subr.bf16.mxu0 0
    %1068 = vmatpush2.bf16.msra.mxu0 0
    %1069 = vmatprep.subr.bf16.mxu0 0
    %1070 = vmatpush2.bf16.msra.mxu0 0
    %1071 = vmatprep.subr.bf16.mxu0 0
    %1072 = vmatpush2.bf16.msra.mxu0 0
    %1073 = vmatprep.subr.bf16.mxu0 0
    %1074 = vmatpush2.bf16.msra.mxu0 0
    %1075 = vmatprep.subr.bf16.mxu0 0
    %1076 = vmatpush2.bf16.msra.mxu0 0
    %1077 = vmatprep.subr.bf16.mxu0 0
    %1078 = vmatpush2.bf16.msra.mxu0 0
    %1079 = vmatprep.subr.bf16.mxu0 0
    %1080 = vmatpush2.bf16.msra.mxu0 0
    %1081 = vmatprep.mubr.bf16.mxu0 0
    %1082 = vmatmul.mubr.bf16.gmra.mxu0 %v1047
    %v1083 = vpop.f32.mrf.mxu0
    %v1084 = vadd.f32 %v1044, %v1083
    %v1085 = vpop.f32.mrf.mxu0
    %v1086 = vpop.f32.mrf.mxu0
    %v1087 = vpop.f32.mrf.mxu0
    %1088 = vdwg.mxu0
    %v1089 = vxor.u32 %v1084, 2147483648
    %v1090 = vmul.f32 %v1089, 1.442695
    %v1091 = vpow.pop %v1090
    %v1092 = vadd.f32 %v1091, 1.0
    %v1093 = vrcp.pop %v1092
    %v1094 = vmul.f32 1.0, %v1093
    %v1095 = vtanh.pop %v1084
    %v1096 = vmul.f32 %v1094, %v956
    %1098 = vrot.lane.b32.xlu0 %v1095, 64
    %v1099 = vpop.permute.xlu0 %1098
    %v1101 = vmul.f32 %v1094, %v1099
    %1103 = vrot.lane.b32.xlu0 %v1101, 32
    %v1104 = vpop.permute.xlu0 %1103
    %v1106 = vadd.f32 %v1096, %v1104
    %v1107 = vtanh.pop %v1106
    %1109 = vrot.lane.b32.xlu0 %v1107, 64
    %v1110 = vpop.permute.xlu0 %1109
    %v1112 = vmul.f32 %v1094, %v1110
    %v1113 = vpack.c.bf16 %v1037, %v1037
    %1115 = vrot.lane.b32.xlu0 %v1113, 32
    %v1116 = vpop.permute.xlu0 %1115
    %v1117 = vrot.slane %v125, 1
    %v1118 = vsel %vm148, %v131, %v1117
    %v1121 = vsel %vm151, %v1116, 0
    %1123 = vmatprep.subr.bf16.mxu0 0
    %1124 = vmatpush1.bf16.msra.mxu0 0
    %1125 = vmatprep.subr.bf16.mxu0 0
    %1126 = vmatpush1.bf16.msra.mxu0 0
    %1127 = vmatprep.subr.bf16.mxu0 0
    %1128 = vmatpush1.bf16.msra.mxu0 0
    %1129 = vmatprep.subr.bf16.mxu0 0
    %1130 = vmatpush1.bf16.msra.mxu0 0
    %1131 = vmatprep.subr.bf16.mxu0 0
    %1132 = vmatpush1.bf16.msra.mxu0 0
    %1133 = vmatprep.subr.bf16.mxu0 0
    %1134 = vmatpush1.bf16.msra.mxu0 0
    %1135 = vmatprep.subr.bf16.mxu0 0
    %1136 = vmatpush1.bf16.msra.mxu0 %v144
    %1137 = vmatprep.subr.bf16.mxu0 0
    %1138 = vmatpush1.bf16.msra.mxu0 %v143
    %1139 = vmatprep.subr.bf16.mxu0 0
    %1140 = vmatpush2.bf16.msra.mxu0 0
    %1141 = vmatprep.subr.bf16.mxu0 0
    %1142 = vmatpush2.bf16.msra.mxu0 0
    %1143 = vmatprep.subr.bf16.mxu0 0
    %1144 = vmatpush2.bf16.msra.mxu0 0
    %1145 = vmatprep.subr.bf16.mxu0 0
    %1146 = vmatpush2.bf16.msra.mxu0 0
    %1147 = vmatprep.subr.bf16.mxu0 0
    %1148 = vmatpush2.bf16.msra.mxu0 0
    %1149 = vmatprep.subr.bf16.mxu0 0
    %1150 = vmatpush2.bf16.msra.mxu0 0
    %1151 = vmatprep.subr.bf16.mxu0 0
    %1152 = vmatpush2.bf16.msra.mxu0 0
    %1153 = vmatprep.subr.bf16.mxu0 0
    %1154 = vmatpush2.bf16.msra.mxu0 0
    %1155 = vmatprep.mubr.bf16.mxu0 0
    %1156 = vmatmul.mubr.bf16.gmra.mxu0 %v1121
    %v1157 = vpop.f32.mrf.mxu0
    %v1158 = vadd.f32 %v1118, %v1157
    %v1159 = vpop.f32.mrf.mxu0
    %v1160 = vpop.f32.mrf.mxu0
    %v1161 = vpop.f32.mrf.mxu0
    %1162 = vdwg.mxu0
    %v1163 = vxor.u32 %v1158, 2147483648
    %v1164 = vmul.f32 %v1163, 1.442695
    %v1165 = vpow.pop %v1164
    %v1166 = vadd.f32 %v1165, 1.0
    %v1167 = vrcp.pop %v1166
    %v1168 = vmul.f32 1.0, %v1167
    %v1169 = vtanh.pop %v1158
    %v1170 = vmul.f32 %v1168, %v1031
    %1172 = vrot.lane.b32.xlu0 %v1169, 64
    %v1173 = vpop.permute.xlu0 %1172
    %v1175 = vmul.f32 %v1168, %v1173
    %1177 = vrot.lane.b32.xlu0 %v1175, 32
    %v1178 = vpop.permute.xlu0 %1177
    %v1180 = vadd.f32 %v1170, %v1178
    %v1181 = vtanh.pop %v1180
    %1183 = vrot.lane.b32.xlu0 %v1181, 64
    %v1184 = vpop.permute.xlu0 %1183
    %v1186 = vmul.f32 %v1168, %v1184
    %v1187 = vpack.c.bf16 %v1112, %v1112
    %1189 = vrot.lane.b32.xlu0 %v1187, 32
    %v1190 = vpop.permute.xlu0 %1189
    %v1191 = vrot.slane %v123, 7
    %v1192 = vrot.slane %v129, 6
    %v1193 = vsel %vm148, %v1192, %v1191
    %v1196 = vsel %vm151, %v1190, 0
    %1198 = vmatprep.subr.bf16.mxu0 0
    %1199 = vmatpush1.bf16.msra.mxu0 0
    %1200 = vmatprep.subr.bf16.mxu0 0
    %1201 = vmatpush1.bf16.msra.mxu0 0
    %1202 = vmatprep.subr.bf16.mxu0 0
    %1203 = vmatpush1.bf16.msra.mxu0 0
    %1204 = vmatprep.subr.bf16.mxu0 0
    %1205 = vmatpush1.bf16.msra.mxu0 0
    %1206 = vmatprep.subr.bf16.mxu0 0
    %1207 = vmatpush1.bf16.msra.mxu0 0
    %1208 = vmatprep.subr.bf16.mxu0 0
    %1209 = vmatpush1.bf16.msra.mxu0 0
    %1210 = vmatprep.subr.bf16.mxu0 0
    %1211 = vmatpush1.bf16.msra.mxu0 %v138
    %1212 = vmatprep.subr.bf16.mxu0 0
    %1213 = vmatpush1.bf16.msra.mxu0 %v137
    %1214 = vmatprep.subr.bf16.mxu0 0
    %1215 = vmatpush2.bf16.msra.mxu0 0
    %1216 = vmatprep.subr.bf16.mxu0 0
    %1217 = vmatpush2.bf16.msra.mxu0 0
    %1218 = vmatprep.subr.bf16.mxu0 0
    %1219 = vmatpush2.bf16.msra.mxu0 0
    %1220 = vmatprep.subr.bf16.mxu0 0
    %1221 = vmatpush2.bf16.msra.mxu0 0
    %1222 = vmatprep.subr.bf16.mxu0 0
    %1223 = vmatpush2.bf16.msra.mxu0 0
    %1224 = vmatprep.subr.bf16.mxu0 0
    %1225 = vmatpush2.bf16.msra.mxu0 0
    %1226 = vmatprep.subr.bf16.mxu0 0
    %1227 = vmatpush2.bf16.msra.mxu0 0
    %1228 = vmatprep.subr.bf16.mxu0 0
    %1229 = vmatpush2.bf16.msra.mxu0 0
    %1230 = vmatprep.mubr.bf16.mxu0 0
    %1231 = vmatmul.mubr.bf16.gmra.mxu0 %v1196
    %v1232 = vpop.f32.mrf.mxu0
    %v1233 = vadd.f32 %v1193, %v1232
    %v1234 = vpop.f32.mrf.mxu0
    %v1235 = vpop.f32.mrf.mxu0
    %v1236 = vpop.f32.mrf.mxu0
    %1237 = vdwg.mxu0
    %v1238 = vxor.u32 %v1233, 2147483648
    %v1239 = vmul.f32 %v1238, 1.442695
    %v1240 = vpow.pop %v1239
    %v1241 = vadd.f32 %v1240, 1.0
    %v1242 = vrcp.pop %v1241
    %v1243 = vmul.f32 1.0, %v1242
    %v1244 = vtanh.pop %v1233
    %v1245 = vmul.f32 %v1243, %v1106
    %1247 = vrot.lane.b32.xlu0 %v1244, 64
    %v1248 = vpop.permute.xlu0 %1247
    %v1250 = vmul.f32 %v1243, %v1248
    %1252 = vrot.lane.b32.xlu0 %v1250, 32
    %v1253 = vpop.permute.xlu0 %1252
    %v1255 = vadd.f32 %v1245, %v1253
    %v1256 = vtanh.pop %v1255
    %1258 = vrot.lane.b32.xlu0 %v1256, 64
    %v1259 = vpop.permute.xlu0 %1258
    %v1261 = vmul.f32 %v1243, %v1259
    %v1262 = vpack.c.bf16 %v1186, %v1186
    %1264 = vrot.lane.b32.xlu0 %v1262, 32
    %v1265 = vpop.permute.xlu0 %1264
    %v1266 = vrot.slane %v131, 7
    %v1267 = vsel %vm148, %v1266, %v125
    %v1270 = vsel %vm151, %v1265, 0
    %1272 = vmatprep.subr.bf16.mxu0 0
    %1273 = vmatpush1.bf16.msra.mxu0 0
    %1274 = vmatprep.subr.bf16.mxu0 0
    %1275 = vmatpush1.bf16.msra.mxu0 0
    %1276 = vmatprep.subr.bf16.mxu0 0
    %1277 = vmatpush1.bf16.msra.mxu0 0
    %1278 = vmatprep.subr.bf16.mxu0 0
    %1279 = vmatpush1.bf16.msra.mxu0 0
    %1280 = vmatprep.subr.bf16.mxu0 0
    %1281 = vmatpush1.bf16.msra.mxu0 0
    %1282 = vmatprep.subr.bf16.mxu0 0
    %1283 = vmatpush1.bf16.msra.mxu0 0
    %1284 = vmatprep.subr.bf16.mxu0 0
    %1285 = vmatpush1.bf16.msra.mxu0 %v144
    %1286 = vmatprep.subr.bf16.mxu0 0
    %1287 = vmatpush1.bf16.msra.mxu0 %v143
    %1288 = vmatprep.subr.bf16.mxu0 0
    %1289 = vmatpush2.bf16.msra.mxu0 0
    %1290 = vmatprep.subr.bf16.mxu0 0
    %1291 = vmatpush2.bf16.msra.mxu0 0
    %1292 = vmatprep.subr.bf16.mxu0 0
    %1293 = vmatpush2.bf16.msra.mxu0 0
    %1294 = vmatprep.subr.bf16.mxu0 0
    %1295 = vmatpush2.bf16.msra.mxu0 0
    %1296 = vmatprep.subr.bf16.mxu0 0
    %1297 = vmatpush2.bf16.msra.mxu0 0
    %1298 = vmatprep.subr.bf16.mxu0 0
    %1299 = vmatpush2.bf16.msra.mxu0 0
    %1300 = vmatprep.subr.bf16.mxu0 0
    %1301 = vmatpush2.bf16.msra.mxu0 0
    %1302 = vmatprep.subr.bf16.mxu0 0
    %1303 = vmatpush2.bf16.msra.mxu0 0
    %1304 = vmatprep.mubr.bf16.mxu0 0
    %1305 = vmatmul.mubr.bf16.gmra.mxu0 %v1270
    %v1306 = vpop.f32.mrf.mxu0
    %v1307 = vadd.f32 %v1267, %v1306
    %v1308 = vpop.f32.mrf.mxu0
    %v1309 = vpop.f32.mrf.mxu0
    %v1310 = vpop.f32.mrf.mxu0
    %1311 = vdwg.mxu0
    %v1312 = vxor.u32 %v1307, 2147483648
    %v1313 = vmul.f32 %v1312, 1.442695
    %v1314 = vpow.pop %v1313
    %v1315 = vadd.f32 %v1314, 1.0
    %v1316 = vrcp.pop %v1315
    %v1317 = vmul.f32 1.0, %v1316
    %v1318 = vtanh.pop %v1307
    %v1319 = vmul.f32 %v1317, %v1180
    %1321 = vrot.lane.b32.xlu0 %v1318, 64
    %v1322 = vpop.permute.xlu0 %1321
    %v1324 = vmul.f32 %v1317, %v1322
    %1326 = vrot.lane.b32.xlu0 %v1324, 32
    %v1327 = vpop.permute.xlu0 %1326
    %v1329 = vadd.f32 %v1319, %v1327
    %v1330 = vtanh.pop %v1329
    %1332 = vrot.lane.b32.xlu0 %v1330, 64
    %v1333 = vpop.permute.xlu0 %1332
    %v1335 = vmul.f32 %v1317, %v1333
    %v1338 = vunpack.c.l.s4 1966171168
    %v1339 = vunpack.c.0.s8 %v1338
    %v1340 = vlaneseq
    %v1341 = vshrl.u32 %v1340, 7
    %v1342 = vsub.s32 %v1339, %v1341
    %v1343 = vrot.slane %v218, %v1342
    %v1344 = vcombine.high %v1343, %v1343
    %v1346 = vunpack.c.l.s4 1966171168
    %v1347 = vunpack.c.0.s8 %v1346
    %v1348 = vlaneseq
    %v1349 = vshrl.u32 %v1348, 7
    %v1350 = vsub.s32 %v1347, %v1349
    %v1351 = vrot.slane %v1343, %v1350
    %v1353 = vunpack.c.l.s4 1966171168
    %v1354 = vunpack.c.0.s8 %v1353
    %v1355 = vlaneseq
    %v1356 = vshrl.u32 %v1355, 7
    %v1357 = vsub.s32 %v1354, %v1356
    %v1358 = vrot.slane %v1344, %v1357
    %v1363 = vunpack.c.l.s4 1966171168
    %v1364 = vunpack.c.0.s8 %v1363
    %v1365 = vlaneseq
    %v1366 = vshrl.u32 %v1365, 7
    %v1367 = vsub.s32 %v1364, %v1366
    %v1368 = vrot.slane %v362, %v1367
    %v1369 = vcombine.high %v1368, %v1368
    %v1371 = vunpack.c.l.s4 1966171168
    %v1372 = vunpack.c.0.s8 %v1371
    %v1373 = vlaneseq
    %v1374 = vshrl.u32 %v1373, 7
    %v1375 = vsub.s32 %v1372, %v1374
    %v1376 = vrot.slane %v1368, %v1375
    %v1378 = vunpack.c.l.s4 1966171168
    %v1379 = vunpack.c.0.s8 %v1378
    %v1380 = vlaneseq
    %v1381 = vshrl.u32 %v1380, 7
    %v1382 = vsub.s32 %v1379, %v1381
    %v1383 = vrot.slane %v1369, %v1382
    %v1386 = vunpack.c.l.s4 1966171168
    %v1387 = vunpack.c.0.s8 %v1386
    %v1388 = vlaneseq
    %v1389 = vshrl.u32 %v1388, 7
    %v1390 = vsub.s32 %v1387, %v1389
    %v1391 = vrot.slane %v512, %v1390
    %v1392 = vcombine.high %v1391, %v1391
    %v1394 = vunpack.c.l.s4 1966171168
    %v1395 = vunpack.c.0.s8 %v1394
    %v1396 = vlaneseq
    %v1397 = vshrl.u32 %v1396, 7
    %v1398 = vsub.s32 %v1395, %v1397
    %v1399 = vrot.slane %v1391, %v1398
    %v1401 = vunpack.c.l.s4 1966171168
    %v1402 = vunpack.c.0.s8 %v1401
    %v1403 = vlaneseq
    %v1404 = vshrl.u32 %v1403, 7
    %v1405 = vsub.s32 %v1402, %v1404
    %v1406 = vrot.slane %v1392, %v1405
    %v1409 = vunpack.c.l.s4 1966171168
    %v1410 = vunpack.c.0.s8 %v1409
    %v1411 = vlaneseq
    %v1412 = vshrl.u32 %v1411, 7
    %v1413 = vsub.s32 %v1410, %v1412
    %v1414 = vrot.slane %v662, %v1413
    %v1415 = vcombine.high %v1414, %v1414
    %v1417 = vunpack.c.l.s4 1966171168
    %v1418 = vunpack.c.0.s8 %v1417
    %v1419 = vlaneseq
    %v1420 = vshrl.u32 %v1419, 7
    %v1421 = vsub.s32 %v1418, %v1420
    %v1422 = vrot.slane %v1414, %v1421
    %v1424 = vunpack.c.l.s4 1966171168
    %v1425 = vunpack.c.0.s8 %v1424
    %v1426 = vlaneseq
    %v1427 = vshrl.u32 %v1426, 7
    %v1428 = vsub.s32 %v1425, %v1427
    %v1429 = vrot.slane %v1415, %v1428
    %v1432 = vunpack.c.l.s4 1966171168
    %v1433 = vunpack.c.0.s8 %v1432
    %v1434 = vlaneseq
    %v1435 = vshrl.u32 %v1434, 7
    %v1436 = vsub.s32 %v1433, %v1435
    %v1437 = vrot.slane %v812, %v1436
    %v1438 = vcombine.high %v1437, %v1437
    %v1440 = vunpack.c.l.s4 1966171168
    %v1441 = vunpack.c.0.s8 %v1440
    %v1442 = vlaneseq
    %v1443 = vshrl.u32 %v1442, 7
    %v1444 = vsub.s32 %v1441, %v1443
    %v1445 = vrot.slane %v1437, %v1444
    %v1447 = vunpack.c.l.s4 1966171168
    %v1448 = vunpack.c.0.s8 %v1447
    %v1449 = vlaneseq
    %v1450 = vshrl.u32 %v1449, 7
    %v1451 = vsub.s32 %v1448, %v1450
    %v1452 = vrot.slane %v1438, %v1451
    %v1455 = vunpack.c.l.s4 1966171168
    %v1456 = vunpack.c.0.s8 %v1455
    %v1457 = vlaneseq
    %v1458 = vshrl.u32 %v1457, 7
    %v1459 = vsub.s32 %v1456, %v1458
    %v1460 = vrot.slane %v962, %v1459
    %v1461 = vcombine.high %v1460, %v1460
    %v1463 = vunpack.c.l.s4 1966171168
    %v1464 = vunpack.c.0.s8 %v1463
    %v1465 = vlaneseq
    %v1466 = vshrl.u32 %v1465, 7
    %v1467 = vsub.s32 %v1464, %v1466
    %v1468 = vrot.slane %v1460, %v1467
    %v1470 = vunpack.c.l.s4 1966171168
    %v1471 = vunpack.c.0.s8 %v1470
    %v1472 = vlaneseq
    %v1473 = vshrl.u32 %v1472, 7
    %v1474 = vsub.s32 %v1471, %v1473
    %v1475 = vrot.slane %v1461, %v1474
    %v1478 = vunpack.c.l.s4 1966171168
    %v1479 = vunpack.c.0.s8 %v1478
    %v1480 = vlaneseq
    %v1481 = vshrl.u32 %v1480, 7
    %v1482 = vsub.s32 %v1479, %v1481
    %v1483 = vrot.slane %v1112, %v1482
    %v1484 = vcombine.high %v1483, %v1483
    %v1486 = vunpack.c.l.s4 1966171168
    %v1487 = vunpack.c.0.s8 %v1486
    %v1488 = vlaneseq
    %v1489 = vshrl.u32 %v1488, 7
    %v1490 = vsub.s32 %v1487, %v1489
    %v1491 = vrot.slane %v1483, %v1490
    %v1493 = vunpack.c.l.s4 1966171168
    %v1494 = vunpack.c.0.s8 %v1493
    %v1495 = vlaneseq
    %v1496 = vshrl.u32 %v1495, 7
    %v1497 = vsub.s32 %v1494, %v1496
    %v1498 = vrot.slane %v1484, %v1497
    %v1501 = vunpack.c.l.s4 1966171168
    %v1502 = vunpack.c.0.s8 %v1501
    %v1503 = vlaneseq
    %v1504 = vshrl.u32 %v1503, 7
    %v1505 = vsub.s32 %v1502, %v1504
    %v1506 = vrot.slane %v1261, %v1505
    %v1507 = vcombine.high %v1506, %v1506
    %v1509 = vunpack.c.l.s4 1966171168
    %v1510 = vunpack.c.0.s8 %v1509
    %v1511 = vlaneseq
    %v1512 = vshrl.u32 %v1511, 7
    %v1513 = vsub.s32 %v1510, %v1512
    %v1514 = vrot.slane %v1506, %v1513
    %v1516 = vunpack.c.l.s4 1966171168
    %v1517 = vunpack.c.0.s8 %v1516
    %v1518 = vlaneseq
    %v1519 = vshrl.u32 %v1518, 7
    %v1520 = vsub.s32 %v1517, %v1519
    %v1521 = vrot.slane %v1507, %v1520
    %v1522 = vlaneseq
    %v1523 = vshrl.u32 %v1522, 7
    %v1524 = vsub.s32 0, %v1523
    %v1525 = vrot.slane %v1376, %v1524
    %v1526 = vlaneseq
    %v1527 = vshrl.u32 %v1526, 7
    %v1528 = vsub.s32 0, %v1527
    %v1529 = vrot.slane %v1383, %v1528
    %v1532 = vlaneseq
    %v1533 = vshrl.u32 %v1532, 7
    %v1534 = vsub.s32 0, %v1533
    %v1535 = vrot.slane %v1399, %v1534
    %v1536 = vlaneseq
    %v1537 = vshrl.u32 %v1536, 7
    %v1538 = vsub.s32 0, %v1537
    %v1539 = vrot.slane %v1406, %v1538
    %v1542 = vlaneseq
    %v1543 = vshrl.u32 %v1542, 7
    %v1544 = vsub.s32 0, %v1543
    %v1545 = vrot.slane %v1422, %v1544
    %v1546 = vlaneseq
    %v1547 = vshrl.u32 %v1546, 7
    %v1548 = vsub.s32 0, %v1547
    %v1549 = vrot.slane %v1429, %v1548
    %v1552 = vlaneseq
    %v1553 = vshrl.u32 %v1552, 7
    %v1554 = vsub.s32 0, %v1553
    %v1555 = vrot.slane %v1445, %v1554
    %v1556 = vlaneseq
    %v1557 = vshrl.u32 %v1556, 7
    %v1558 = vsub.s32 0, %v1557
    %v1559 = vrot.slane %v1452, %v1558
    %v1562 = vlaneseq
    %v1563 = vshrl.u32 %v1562, 7
    %v1564 = vsub.s32 0, %v1563
    %v1565 = vrot.slane %v1468, %v1564
    %v1566 = vlaneseq
    %v1567 = vshrl.u32 %v1566, 7
    %v1568 = vsub.s32 0, %v1567
    %v1569 = vrot.slane %v1475, %v1568
    %v1572 = vlaneseq
    %v1573 = vshrl.u32 %v1572, 7
    %v1574 = vsub.s32 0, %v1573
    %v1575 = vrot.slane %v1491, %v1574
    %v1576 = vlaneseq
    %v1577 = vshrl.u32 %v1576, 7
    %v1578 = vsub.s32 0, %v1577
    %v1579 = vrot.slane %v1498, %v1578
    %v1582 = vlaneseq
    %v1583 = vshrl.u32 %v1582, 7
    %v1584 = vsub.s32 0, %v1583
    %v1585 = vrot.slane %v1514, %v1584
    %v1586 = vlaneseq
    %v1587 = vshrl.u32 %v1586, 7
    %v1588 = vsub.s32 0, %v1587
    %v1589 = vrot.slane %v1521, %v1588
    %vm1592 = vcmask 1040384
    %v1593 = vsel %vm1592, %v1351, %v1525
    %v1594 = vsel %vm1592, %v1358, %v1529
    %vm1595 = vcmask 1041408
    %v1596 = vsel %vm1595, %v1593, %v1535
    %v1597 = vsel %vm1595, %v1594, %v1539
    %vm1598 = vcmask 1042432
    %v1599 = vsel %vm1598, %v1596, %v1545
    %v1600 = vsel %vm1598, %v1597, %v1549
    %v1601 = vsel %vm51, %v1599, %v1555
    %v1602 = vsel %vm51, %v1600, %v1559
    %vm1603 = vcmask 1044480
    %v1604 = vsel %vm1603, %v1601, %v1565
    %v1605 = vsel %vm1603, %v1602, %v1569
    %vm1606 = vcmask 1045504
    %v1607 = vsel %vm1606, %v1604, %v1575
    %v1608 = vsel %vm1606, %v1605, %v1579
    %vm1609 = vcmask 1046528
    %v1610 = vsel %vm1609, %v1607, %v1585
    %v1611 = vsel %vm1609, %v1608, %v1589
    %v1614 = vunpack.c.l.s4 1966171168
    %v1615 = vunpack.c.0.s8 %v1614
    %v1616 = vlaneseq
    %v1617 = vshrl.u32 %v1616, 7
    %v1618 = vsub.s32 %v1615, %v1617
    %v1619 = vrot.slane %v1335, %v1618
    %v1620 = vcombine.high %v1619, %v1619
    %v1622 = vunpack.c.l.s4 1966171168
    %v1623 = vunpack.c.0.s8 %v1622
    %v1624 = vlaneseq
    %v1625 = vshrl.u32 %v1624, 7
    %v1626 = vsub.s32 %v1623, %v1625
    %v1627 = vrot.slane %v1619, %v1626
    %v1629 = vunpack.c.l.s4 1966171168
    %v1630 = vunpack.c.0.s8 %v1629
    %v1631 = vlaneseq
    %v1632 = vshrl.u32 %v1631, 7
    %v1633 = vsub.s32 %v1630, %v1632
    %v1634 = vrot.slane %v1620, %v1633
    %v1639 = vunpack.c.l.s4 1966171168
    %v1640 = vunpack.c.0.s8 %v1639
    %v1641 = vlaneseq
    %v1642 = vshrl.u32 %v1641, 7
    %v1643 = vsub.s32 %v1640, %v1642
    %v1644 = vrot.slane %v1186, %v1643
    %v1645 = vcombine.high %v1644, %v1644
    %v1647 = vunpack.c.l.s4 1966171168
    %v1648 = vunpack.c.0.s8 %v1647
    %v1649 = vlaneseq
    %v1650 = vshrl.u32 %v1649, 7
    %v1651 = vsub.s32 %v1648, %v1650
    %v1652 = vrot.slane %v1644, %v1651
    %v1654 = vunpack.c.l.s4 1966171168
    %v1655 = vunpack.c.0.s8 %v1654
    %v1656 = vlaneseq
    %v1657 = vshrl.u32 %v1656, 7
    %v1658 = vsub.s32 %v1655, %v1657
    %v1659 = vrot.slane %v1645, %v1658
    %v1662 = vunpack.c.l.s4 1966171168
    %v1663 = vunpack.c.0.s8 %v1662
    %v1664 = vlaneseq
    %v1665 = vshrl.u32 %v1664, 7
    %v1666 = vsub.s32 %v1663, %v1665
    %v1667 = vrot.slane %v1037, %v1666
    %v1668 = vcombine.high %v1667, %v1667
    %v1670 = vunpack.c.l.s4 1966171168
    %v1671 = vunpack.c.0.s8 %v1670
    %v1672 = vlaneseq
    %v1673 = vshrl.u32 %v1672, 7
    %v1674 = vsub.s32 %v1671, %v1673
    %v1675 = vrot.slane %v1667, %v1674
    %v1677 = vunpack.c.l.s4 1966171168
    %v1678 = vunpack.c.0.s8 %v1677
    %v1679 = vlaneseq
    %v1680 = vshrl.u32 %v1679, 7
    %v1681 = vsub.s32 %v1678, %v1680
    %v1682 = vrot.slane %v1668, %v1681
    %v1685 = vunpack.c.l.s4 1966171168
    %v1686 = vunpack.c.0.s8 %v1685
    %v1687 = vlaneseq
    %v1688 = vshrl.u32 %v1687, 7
    %v1689 = vsub.s32 %v1686, %v1688
    %v1690 = vrot.slane %v887, %v1689
    %v1691 = vcombine.high %v1690, %v1690
    %v1693 = vunpack.c.l.s4 1966171168
    %v1694 = vunpack.c.0.s8 %v1693
    %v1695 = vlaneseq
    %v1696 = vshrl.u32 %v1695, 7
    %v1697 = vsub.s32 %v1694, %v1696
    %v1698 = vrot.slane %v1690, %v1697
    %v1700 = vunpack.c.l.s4 1966171168
    %v1701 = vunpack.c.0.s8 %v1700
    %v1702 = vlaneseq
    %v1703 = vshrl.u32 %v1702, 7
    %v1704 = vsub.s32 %v1701, %v1703
    %v1705 = vrot.slane %v1691, %v1704
    %v1708 = vunpack.c.l.s4 1966171168
    %v1709 = vunpack.c.0.s8 %v1708
    %v1710 = vlaneseq
    %v1711 = vshrl.u32 %v1710, 7
    %v1712 = vsub.s32 %v1709, %v1711
    %v1713 = vrot.slane %v737, %v1712
    %v1714 = vcombine.high %v1713, %v1713
    %v1716 = vunpack.c.l.s4 1966171168
    %v1717 = vunpack.c.0.s8 %v1716
    %v1718 = vlaneseq
    %v1719 = vshrl.u32 %v1718, 7
    %v1720 = vsub.s32 %v1717, %v1719
    %v1721 = vrot.slane %v1713, %v1720
    %v1723 = vunpack.c.l.s4 1966171168
    %v1724 = vunpack.c.0.s8 %v1723
    %v1725 = vlaneseq
    %v1726 = vshrl.u32 %v1725, 7
    %v1727 = vsub.s32 %v1724, %v1726
    %v1728 = vrot.slane %v1714, %v1727
    %v1731 = vunpack.c.l.s4 1966171168
    %v1732 = vunpack.c.0.s8 %v1731
    %v1733 = vlaneseq
    %v1734 = vshrl.u32 %v1733, 7
    %v1735 = vsub.s32 %v1732, %v1734
    %v1736 = vrot.slane %v587, %v1735
    %v1737 = vcombine.high %v1736, %v1736
    %v1739 = vunpack.c.l.s4 1966171168
    %v1740 = vunpack.c.0.s8 %v1739
    %v1741 = vlaneseq
    %v1742 = vshrl.u32 %v1741, 7
    %v1743 = vsub.s32 %v1740, %v1742
    %v1744 = vrot.slane %v1736, %v1743
    %v1746 = vunpack.c.l.s4 1966171168
    %v1747 = vunpack.c.0.s8 %v1746
    %v1748 = vlaneseq
    %v1749 = vshrl.u32 %v1748, 7
    %v1750 = vsub.s32 %v1747, %v1749
    %v1751 = vrot.slane %v1737, %v1750
    %v1754 = vunpack.c.l.s4 1966171168
    %v1755 = vunpack.c.0.s8 %v1754
    %v1756 = vlaneseq
    %v1757 = vshrl.u32 %v1756, 7
    %v1758 = vsub.s32 %v1755, %v1757
    %v1759 = vrot.slane %v437, %v1758
    %v1760 = vcombine.high %v1759, %v1759
    %v1762 = vunpack.c.l.s4 1966171168
    %v1763 = vunpack.c.0.s8 %v1762
    %v1764 = vlaneseq
    %v1765 = vshrl.u32 %v1764, 7
    %v1766 = vsub.s32 %v1763, %v1765
    %v1767 = vrot.slane %v1759, %v1766
    %v1769 = vunpack.c.l.s4 1966171168
    %v1770 = vunpack.c.0.s8 %v1769
    %v1771 = vlaneseq
    %v1772 = vshrl.u32 %v1771, 7
    %v1773 = vsub.s32 %v1770, %v1772
    %v1774 = vrot.slane %v1760, %v1773
    %v1777 = vunpack.c.l.s4 1966171168
    %v1778 = vunpack.c.0.s8 %v1777
    %v1779 = vlaneseq
    %v1780 = vshrl.u32 %v1779, 7
    %v1781 = vsub.s32 %v1778, %v1780
    %v1782 = vrot.slane %v288, %v1781
    %v1783 = vcombine.high %v1782, %v1782
    %v1785 = vunpack.c.l.s4 1966171168
    %v1786 = vunpack.c.0.s8 %v1785
    %v1787 = vlaneseq
    %v1788 = vshrl.u32 %v1787, 7
    %v1789 = vsub.s32 %v1786, %v1788
    %v1790 = vrot.slane %v1782, %v1789
    %v1792 = vunpack.c.l.s4 1966171168
    %v1793 = vunpack.c.0.s8 %v1792
    %v1794 = vlaneseq
    %v1795 = vshrl.u32 %v1794, 7
    %v1796 = vsub.s32 %v1793, %v1795
    %v1797 = vrot.slane %v1783, %v1796
    %v1798 = vlaneseq
    %v1799 = vshrl.u32 %v1798, 7
    %v1800 = vsub.s32 0, %v1799
    %v1801 = vrot.slane %v1652, %v1800
    %v1802 = vlaneseq
    %v1803 = vshrl.u32 %v1802, 7
    %v1804 = vsub.s32 0, %v1803
    %v1805 = vrot.slane %v1659, %v1804
    %v1808 = vlaneseq
    %v1809 = vshrl.u32 %v1808, 7
    %v1810 = vsub.s32 0, %v1809
    %v1811 = vrot.slane %v1675, %v1810
    %v1812 = vlaneseq
    %v1813 = vshrl.u32 %v1812, 7
    %v1814 = vsub.s32 0, %v1813
    %v1815 = vrot.slane %v1682, %v1814
    %v1818 = vlaneseq
    %v1819 = vshrl.u32 %v1818, 7
    %v1820 = vsub.s32 0, %v1819
    %v1821 = vrot.slane %v1698, %v1820
    %v1822 = vlaneseq
    %v1823 = vshrl.u32 %v1822, 7
    %v1824 = vsub.s32 0, %v1823
    %v1825 = vrot.slane %v1705, %v1824
    %v1828 = vlaneseq
    %v1829 = vshrl.u32 %v1828, 7
    %v1830 = vsub.s32 0, %v1829
    %v1831 = vrot.slane %v1721, %v1830
    %v1832 = vlaneseq
    %v1833 = vshrl.u32 %v1832, 7
    %v1834 = vsub.s32 0, %v1833
    %v1835 = vrot.slane %v1728, %v1834
    %v1838 = vlaneseq
    %v1839 = vshrl.u32 %v1838, 7
    %v1840 = vsub.s32 0, %v1839
    %v1841 = vrot.slane %v1744, %v1840
    %v1842 = vlaneseq
    %v1843 = vshrl.u32 %v1842, 7
    %v1844 = vsub.s32 0, %v1843
    %v1845 = vrot.slane %v1751, %v1844
    %v1848 = vlaneseq
    %v1849 = vshrl.u32 %v1848, 7
    %v1850 = vsub.s32 0, %v1849
    %v1851 = vrot.slane %v1767, %v1850
    %v1852 = vlaneseq
    %v1853 = vshrl.u32 %v1852, 7
    %v1854 = vsub.s32 0, %v1853
    %v1855 = vrot.slane %v1774, %v1854
    %v1858 = vlaneseq
    %v1859 = vshrl.u32 %v1858, 7
    %v1860 = vsub.s32 0, %v1859
    %v1861 = vrot.slane %v1790, %v1860
    %v1862 = vlaneseq
    %v1863 = vshrl.u32 %v1862, 7
    %v1864 = vsub.s32 0, %v1863
    %v1865 = vrot.slane %v1797, %v1864
    %v1868 = vsel %vm1592, %v1627, %v1801
    %v1869 = vsel %vm1592, %v1634, %v1805
    %v1870 = vsel %vm1595, %v1868, %v1811
    %v1871 = vsel %vm1595, %v1869, %v1815
    %v1872 = vsel %vm1598, %v1870, %v1821
    %v1873 = vsel %vm1598, %v1871, %v1825
    %v1874 = vsel %vm51, %v1872, %v1831
    %v1875 = vsel %vm51, %v1873, %v1835
    %v1876 = vsel %vm1603, %v1874, %v1841
    %v1877 = vsel %vm1603, %v1875, %v1845
    %v1878 = vsel %vm1606, %v1876, %v1851
    %v1879 = vsel %vm1606, %v1877, %v1855
    %v1880 = vsel %vm1609, %v1878, %v1861
    %v1881 = vsel %vm1609, %v1879, %v1865
    %1884 = vrot.lane.b32.xlu0 %v1610, 32
    %v1885 = vpop.permute.xlu0 %1884
    %1886 = vrot.lane.b32.xlu0 %v1611, 32
    %v1887 = vpop.permute.xlu0 %1886
    %1892 = vrot.lane.b32.xlu0 %v1880, 64
    %v1893 = vpop.permute.xlu0 %1892
    %1894 = vrot.lane.b32.xlu0 %v1881, 64
    %v1895 = vpop.permute.xlu0 %1894
    %v1898 = vsel %vm151, %v1885, %v1893
    %v1899 = vsel %vm151, %v1887, %v1895
    %vm1900 = vcmask 523264
    %v1902 = vsel %vm1900, %v1898, 0
    %1904 = vmatprep.subr.mxu0 0.0
    %1905 = vmatpush1.xpose.msra.mxu0 0.0
    %1906 = vmatprep.subr.mxu0 0.0
    %1907 = vmatpush1.xpose.msra.mxu0 0.0
    %1908 = vmatprep.subr.mxu0 0.0
    %1909 = vmatpush1.xpose.msra.mxu0 0.0
    %1910 = vmatprep.subr.mxu0 0.0
    %1911 = vmatpush1.xpose.msra.mxu0 0.0
    %1912 = vmatprep.subr.mxu0 0.0
    %1913 = vmatpush1.xpose.msra.mxu0 0.0
    %1914 = vmatprep.subr.mxu0 0.0
    %1915 = vmatpush1.xpose.msra.mxu0 0.0
    %1916 = vmatprep.subr.mxu0 0.0
    %1917 = vmatpush1.xpose.msra.mxu0 0.0
    %1918 = vmatprep.subr.mxu0 0.0
    %1919 = vmatpush1.xpose.msra.mxu0 0.0
    %1920 = vmatprep.subr.mxu0 0.0
    %1921 = vmatpush1.xpose.msra.mxu0 0.0
    %1922 = vmatprep.subr.mxu0 0.0
    %1923 = vmatpush1.xpose.msra.mxu0 0.0
    %1924 = vmatprep.subr.mxu0 0.0
    %1925 = vmatpush1.xpose.msra.mxu0 0.0
    %1926 = vmatprep.subr.mxu0 0.0
    %1927 = vmatpush1.xpose.msra.mxu0 0.0
    %1928 = vmatprep.subr.mxu0 0.0
    %1929 = vmatpush1.xpose.msra.mxu0 0.0
    %1930 = vmatprep.subr.mxu0 0.0
    %1931 = vmatpush1.xpose.msra.mxu0 0.0
    %1932 = vmatprep.subr.mxu0 0.0
    %1933 = vmatpush1.xpose.msra.mxu0 0.0
    %1934 = vmatprep.subr.mxu0 0.0
    %1935 = vmatpush1.xpose.msra.mxu0 %v1902
    %1936 = vmatprep.subr.mxu0 0.0
    %1937 = vmatpush2.xpose.msra.mxu0 0.0
    %1938 = vmatprep.subr.mxu0 0.0
    %1939 = vmatpush2.xpose.msra.mxu0 0.0
    %1940 = vmatprep.subr.mxu0 0.0
    %1941 = vmatpush2.xpose.msra.mxu0 0.0
    %1942 = vmatprep.subr.mxu0 0.0
    %1943 = vmatpush2.xpose.msra.mxu0 0.0
    %1944 = vmatprep.subr.mxu0 0.0
    %1945 = vmatpush2.xpose.msra.mxu0 0.0
    %1946 = vmatprep.subr.mxu0 0.0
    %1947 = vmatpush2.xpose.msra.mxu0 0.0
    %1948 = vmatprep.subr.mxu0 0.0
    %1949 = vmatpush2.xpose.msra.mxu0 0.0
    %1950 = vmatprep.subr.mxu0 0.0
    %1951 = vmatpush2.xpose.msra.mxu0 0.0
    %1952 = vmatprep.subr.mxu0 0.0
    %1953 = vmatpush2.xpose.msra.mxu0 0.0
    %1954 = vmatprep.subr.mxu0 0.0
    %1955 = vmatpush2.xpose.msra.mxu0 0.0
    %1956 = vmatprep.subr.mxu0 0.0
    %1957 = vmatpush2.xpose.msra.mxu0 0.0
    %1958 = vmatprep.subr.mxu0 0.0
    %1959 = vmatpush2.xpose.msra.mxu0 0.0
    %1960 = vmatprep.subr.mxu0 0.0
    %1961 = vmatpush2.xpose.msra.mxu0 0.0
    %1962 = vmatprep.subr.mxu0 0.0
    %1963 = vmatpush2.xpose.msra.mxu0 0.0
    %1964 = vmatprep.subr.mxu0 0.0
    %1965 = vmatpush2.xpose.msra.mxu0 0.0
    %1966 = vmatprep.subr.mxu0 0.0
    %1967 = vmatpush2.xpose.msra.mxu0 0.0
    %1968 = vmatprep.mubr.f32.mxu0 0.0
    %1969 = vmatmul.mubr.f32.gmra.mxu0 %v1902
    %v1970 = vpop.f32.mrf.mxu0
    %v1971 = vadd.f32 0.0, %v1970
    %v1972 = vpop.f32.mrf.mxu0
    %1973 = vdwg.mxu0
    %v1975 = vsel %vm1900, %v1899, 0
    %1977 = vmatprep.subr.mxu0 0.0
    %1978 = vmatpush1.xpose.msra.mxu0 0.0
    %1979 = vmatprep.subr.mxu0 0.0
    %1980 = vmatpush1.xpose.msra.mxu0 0.0
    %1981 = vmatprep.subr.mxu0 0.0
    %1982 = vmatpush1.xpose.msra.mxu0 0.0
    %1983 = vmatprep.subr.mxu0 0.0
    %1984 = vmatpush1.xpose.msra.mxu0 0.0
    %1985 = vmatprep.subr.mxu0 0.0
    %1986 = vmatpush1.xpose.msra.mxu0 0.0
    %1987 = vmatprep.subr.mxu0 0.0
    %1988 = vmatpush1.xpose.msra.mxu0 0.0
    %1989 = vmatprep.subr.mxu0 0.0
    %1990 = vmatpush1.xpose.msra.mxu0 0.0
    %1991 = vmatprep.subr.mxu0 0.0
    %1992 = vmatpush1.xpose.msra.mxu0 0.0
    %1993 = vmatprep.subr.mxu0 0.0
    %1994 = vmatpush1.xpose.msra.mxu0 0.0
    %1995 = vmatprep.subr.mxu0 0.0
    %1996 = vmatpush1.xpose.msra.mxu0 0.0
    %1997 = vmatprep.subr.mxu0 0.0
    %1998 = vmatpush1.xpose.msra.mxu0 0.0
    %1999 = vmatprep.subr.mxu0 0.0
    %2000 = vmatpush1.xpose.msra.mxu0 0.0
    %2001 = vmatprep.subr.mxu0 0.0
    %2002 = vmatpush1.xpose.msra.mxu0 0.0
    %2003 = vmatprep.subr.mxu0 0.0
    %2004 = vmatpush1.xpose.msra.mxu0 0.0
    %2005 = vmatprep.subr.mxu0 0.0
    %2006 = vmatpush1.xpose.msra.mxu0 0.0
    %2007 = vmatprep.subr.mxu0 0.0
    %2008 = vmatpush1.xpose.msra.mxu0 %v1975
    %2009 = vmatprep.subr.mxu0 0.0
    %2010 = vmatpush2.xpose.msra.mxu0 0.0
    %2011 = vmatprep.subr.mxu0 0.0
    %2012 = vmatpush2.xpose.msra.mxu0 0.0
    %2013 = vmatprep.subr.mxu0 0.0
    %2014 = vmatpush2.xpose.msra.mxu0 0.0
    %2015 = vmatprep.subr.mxu0 0.0
    %2016 = vmatpush2.xpose.msra.mxu0 0.0
    %2017 = vmatprep.subr.mxu0 0.0
    %2018 = vmatpush2.xpose.msra.mxu0 0.0
    %2019 = vmatprep.subr.mxu0 0.0
    %2020 = vmatpush2.xpose.msra.mxu0 0.0
    %2021 = vmatprep.subr.mxu0 0.0
    %2022 = vmatpush2.xpose.msra.mxu0 0.0
    %2023 = vmatprep.subr.mxu0 0.0
    %2024 = vmatpush2.xpose.msra.mxu0 0.0
    %2025 = vmatprep.subr.mxu0 0.0
    %2026 = vmatpush2.xpose.msra.mxu0 0.0
    %2027 = vmatprep.subr.mxu0 0.0
    %2028 = vmatpush2.xpose.msra.mxu0 0.0
    %2029 = vmatprep.subr.mxu0 0.0
    %2030 = vmatpush2.xpose.msra.mxu0 0.0
    %2031 = vmatprep.subr.mxu0 0.0
    %2032 = vmatpush2.xpose.msra.mxu0 0.0
    %2033 = vmatprep.subr.mxu0 0.0
    %2034 = vmatpush2.xpose.msra.mxu0 0.0
    %2035 = vmatprep.subr.mxu0 0.0
    %2036 = vmatpush2.xpose.msra.mxu0 0.0
    %2037 = vmatprep.subr.mxu0 0.0
    %2038 = vmatpush2.xpose.msra.mxu0 0.0
    %2039 = vmatprep.subr.mxu0 0.0
    %2040 = vmatpush2.xpose.msra.mxu0 0.0
    %2041 = vmatprep.mubr.f32.mxu0 0.0
    %2042 = vmatmul.mubr.f32.gmra.mxu0 %v1975
    %v2043 = vpop.f32.mrf.mxu0
    %v2044 = vadd.f32 0.0, %v2043
    %v2045 = vpop.f32.mrf.mxu0
    %2046 = vdwg.mxu0
    %v2047 = vmul.f32 %v1971, 0.125
    %v2048 = vmul.f32 %v2044, 0.125
    %vm2049 = vcmask 64512
    %v2050 = vsel %vm2049, %v2047, -inf
    %2051 = vmax.xlane.f32.xlu0 %v2050
    %v2052 = vpop.xlane.xlu0 %2051
    %v2053 = vsel %vm2049, %v2048, -inf
    %2054 = vmax.xlane.f32.xlu0 %v2053
    %v2055 = vpop.xlane.xlu0 %2054
    %v2056 = vsub.f32 %v2047, %v2052
    %v2057 = vsub.f32 %v2048, %v2055
    %v2058 = vmul.f32 %v2056, 1.442695
    %v2059 = vpow.pop %v2058
    %v2060 = vmul.f32 %v2057, 1.442695
    %v2061 = vpow.pop %v2060
    %v2062 = vsel %vm2049, %v2059, 0.0
    %2063 = vadd.xlane.f32.xlu0 %v2062
    %v2064 = vpop.xlane.xlu0 %2063
    %v2065 = vsel %vm2049, %v2061, 0.0
    %2066 = vadd.xlane.f32.xlu0 %v2065
    %v2067 = vpop.xlane.xlu0 %2066
    %v2068 = vrcp.pop %v2064
    %v2069 = vmul.f32 %v2059, %v2068
    %v2070 = vrcp.pop %v2067
    %v2071 = vmul.f32 %v2061, %v2070
    %2072 = vst.msk [vmem:[#allocation2] sm:$0xff] %vm2049, %v2069
    %2073 = vst.msk [vmem:[#allocation2 + $0x8] sm:$0xff] %vm2049, %v2071
    %v2075 = vrot.slane %v2069, 7
    %v2076 = vsel %vm2049, %v2075, 0
    %2078 = vmatprep.subr.mxu0 0.0
    %2079 = vmatpush1.msra.mxu0 0.0
    %2080 = vmatprep.subr.mxu0 0.0
    %2081 = vmatpush1.msra.mxu0 0.0
    %2082 = vmatprep.subr.mxu0 0.0
    %2083 = vmatpush1.msra.mxu0 0.0
    %2084 = vmatprep.subr.mxu0 0.0
    %2085 = vmatpush1.msra.mxu0 0.0
    %2086 = vmatprep.subr.mxu0 0.0
    %2087 = vmatpush1.msra.mxu0 0.0
    %2088 = vmatprep.subr.mxu0 0.0
    %2089 = vmatpush1.msra.mxu0 0.0
    %2090 = vmatprep.subr.mxu0 0.0
    %2091 = vmatpush1.msra.mxu0 0.0
    %2092 = vmatprep.subr.mxu0 0.0
    %2093 = vmatpush1.msra.mxu0 0.0
    %2094 = vmatprep.subr.mxu0 0.0
    %2095 = vmatpush1.msra.mxu0 0.0
    %2096 = vmatprep.subr.mxu0 0.0
    %2097 = vmatpush1.msra.mxu0 0.0
    %2098 = vmatprep.subr.mxu0 0.0
    %2099 = vmatpush1.msra.mxu0 0.0
    %2100 = vmatprep.subr.mxu0 0.0
    %2101 = vmatpush1.msra.mxu0 0.0
    %2102 = vmatprep.subr.mxu0 0.0
    %2103 = vmatpush1.msra.mxu0 0.0
    %2104 = vmatprep.subr.mxu0 0.0
    %2105 = vmatpush1.msra.mxu0 0.0
    %2106 = vmatprep.subr.mxu0 0.0
    %2107 = vmatpush1.msra.mxu0 0.0
    %2108 = vmatprep.subr.mxu0 0.0
    %2109 = vmatpush1.msra.mxu0 %v1898
    %2110 = vmatprep.subr.mxu0 0.0
    %2111 = vmatpush2.msra.mxu0 0.0
    %2112 = vmatprep.subr.mxu0 0.0
    %2113 = vmatpush2.msra.mxu0 0.0
    %2114 = vmatprep.subr.mxu0 0.0
    %2115 = vmatpush2.msra.mxu0 0.0
    %2116 = vmatprep.subr.mxu0 0.0
    %2117 = vmatpush2.msra.mxu0 0.0
    %2118 = vmatprep.subr.mxu0 0.0
    %2119 = vmatpush2.msra.mxu0 0.0
    %2120 = vmatprep.subr.mxu0 0.0
    %2121 = vmatpush2.msra.mxu0 0.0
    %2122 = vmatprep.subr.mxu0 0.0
    %2123 = vmatpush2.msra.mxu0 0.0
    %2124 = vmatprep.subr.mxu0 0.0
    %2125 = vmatpush2.msra.mxu0 0.0
    %2126 = vmatprep.subr.mxu0 0.0
    %2127 = vmatpush2.msra.mxu0 0.0
    %2128 = vmatprep.subr.mxu0 0.0
    %2129 = vmatpush2.msra.mxu0 0.0
    %2130 = vmatprep.subr.mxu0 0.0
    %2131 = vmatpush2.msra.mxu0 0.0
    %2132 = vmatprep.subr.mxu0 0.0
    %2133 = vmatpush2.msra.mxu0 0.0
    %2134 = vmatprep.subr.mxu0 0.0
    %2135 = vmatpush2.msra.mxu0 0.0
    %2136 = vmatprep.subr.mxu0 0.0
    %2137 = vmatpush2.msra.mxu0 0.0
    %2138 = vmatprep.subr.mxu0 0.0
    %2139 = vmatpush2.msra.mxu0 0.0
    %2140 = vmatprep.subr.mxu0 0.0
    %2141 = vmatpush2.msra.mxu0 0.0
    %2142 = vmatprep.mubr.f32.mxu0 0.0
    %2143 = vmatmul.mubr.f32.gmra.mxu0 %v2076
    %v2144 = vpop.f32.mrf.mxu0
    %v2145 = vadd.f32 0.0, %v2144
    %v2146 = vpop.f32.mrf.mxu0
    %2147 = vdwg.mxu0
    %v2149 = vrot.slane %v2071, 7
    %v2150 = vsel %vm2049, %v2149, 0
    %2152 = vmatprep.subr.mxu0 0.0
    %2153 = vmatpush1.msra.mxu0 0.0
    %2154 = vmatprep.subr.mxu0 0.0
    %2155 = vmatpush1.msra.mxu0 0.0
    %2156 = vmatprep.subr.mxu0 0.0
    %2157 = vmatpush1.msra.mxu0 0.0
    %2158 = vmatprep.subr.mxu0 0.0
    %2159 = vmatpush1.msra.mxu0 0.0
    %2160 = vmatprep.subr.mxu0 0.0
    %2161 = vmatpush1.msra.mxu0 0.0
    %2162 = vmatprep.subr.mxu0 0.0
    %2163 = vmatpush1.msra.mxu0 0.0
    %2164 = vmatprep.subr.mxu0 0.0
    %2165 = vmatpush1.msra.mxu0 0.0
    %2166 = vmatprep.subr.mxu0 0.0
    %2167 = vmatpush1.msra.mxu0 0.0
    %2168 = vmatprep.subr.mxu0 0.0
    %2169 = vmatpush1.msra.mxu0 0.0
    %2170 = vmatprep.subr.mxu0 0.0
    %2171 = vmatpush1.msra.mxu0 0.0
    %2172 = vmatprep.subr.mxu0 0.0
    %2173 = vmatpush1.msra.mxu0 0.0
    %2174 = vmatprep.subr.mxu0 0.0
    %2175 = vmatpush1.msra.mxu0 0.0
    %2176 = vmatprep.subr.mxu0 0.0
    %2177 = vmatpush1.msra.mxu0 0.0
    %2178 = vmatprep.subr.mxu0 0.0
    %2179 = vmatpush1.msra.mxu0 0.0
    %2180 = vmatprep.subr.mxu0 0.0
    %2181 = vmatpush1.msra.mxu0 0.0
    %2182 = vmatprep.subr.mxu0 0.0
    %2183 = vmatpush1.msra.mxu0 %v1899
    %2184 = vmatprep.subr.mxu0 0.0
    %2185 = vmatpush2.msra.mxu0 0.0
    %2186 = vmatprep.subr.mxu0 0.0
    %2187 = vmatpush2.msra.mxu0 0.0
    %2188 = vmatprep.subr.mxu0 0.0
    %2189 = vmatpush2.msra.mxu0 0.0
    %2190 = vmatprep.subr.mxu0 0.0
    %2191 = vmatpush2.msra.mxu0 0.0
    %2192 = vmatprep.subr.mxu0 0.0
    %2193 = vmatpush2.msra.mxu0 0.0
    %2194 = vmatprep.subr.mxu0 0.0
    %2195 = vmatpush2.msra.mxu0 0.0
    %2196 = vmatprep.subr.mxu0 0.0
    %2197 = vmatpush2.msra.mxu0 0.0
    %2198 = vmatprep.subr.mxu0 0.0
    %2199 = vmatpush2.msra.mxu0 0.0
    %2200 = vmatprep.subr.mxu0 0.0
    %2201 = vmatpush2.msra.mxu0 0.0
    %2202 = vmatprep.subr.mxu0 0.0
    %2203 = vmatpush2.msra.mxu0 0.0
    %2204 = vmatprep.subr.mxu0 0.0
    %2205 = vmatpush2.msra.mxu0 0.0
    %2206 = vmatprep.subr.mxu0 0.0
    %2207 = vmatpush2.msra.mxu0 0.0
    %2208 = vmatprep.subr.mxu0 0.0
    %2209 = vmatpush2.msra.mxu0 0.0
    %2210 = vmatprep.subr.mxu0 0.0
    %2211 = vmatpush2.msra.mxu0 0.0
    %2212 = vmatprep.subr.mxu0 0.0
    %2213 = vmatpush2.msra.mxu0 0.0
    %2214 = vmatprep.subr.mxu0 0.0
    %2215 = vmatpush2.msra.mxu0 0.0
    %2216 = vmatprep.mubr.f32.mxu0 0.0
    %2217 = vmatmul.mubr.f32.gmra.mxu0 %v2150
    %v2218 = vpop.f32.mrf.mxu0
    %v2219 = vadd.f32 0.0, %v2218
    %v2220 = vpop.f32.mrf.mxu0
    %2221 = vdwg.mxu0
    %v2222 = vld [vmem:[%s4] sm:$0xff]
    %v2223 = vld [vmem:[%s4 + $0x8] sm:$0xff]
    %v2224 = vld [vmem:[%s4 + $0x10] sm:$0xff]
    %v2225 = vld [vmem:[%s4 + $0x18] sm:$0xff]
    %v2226 = vld [vmem:[%s4 + $0x20] sm:$0xff]
    %v2227 = vld [vmem:[%s4 + $0x28] sm:$0xff]
    %v2228 = vld [vmem:[%s4 + $0x30] sm:$0xff]
    %v2229 = vld [vmem:[%s4 + $0x38] sm:$0xff]
    %v2230 = vld [vmem:[%s5] sm:$0x1]
    %v2232 = vlaneseq
    %v2233 = vshrl.u32 %v2232, 7
    %v2234 = vsub.s32 0, %v2233
    %v2235 = vrot.slane %v2230, %v2234
    %v2239 = vrot.slane %v2219, 7
    %v2240 = vsel %vm148, %v2239, %v2145
    %v2241 = vsel %vm1900, %v2240, 0
    %2243 = vmatprep.subr.mxu0 0.0
    %2244 = vmatpush1.msra.mxu0 0.0
    %2245 = vmatprep.subr.mxu0 0.0
    %2246 = vmatpush1.msra.mxu0 0.0
    %2247 = vmatprep.subr.mxu0 0.0
    %2248 = vmatpush1.msra.mxu0 0.0
    %2249 = vmatprep.subr.mxu0 0.0
    %2250 = vmatpush1.msra.mxu0 0.0
    %2251 = vmatprep.subr.mxu0 0.0
    %2252 = vmatpush1.msra.mxu0 0.0
    %2253 = vmatprep.subr.mxu0 0.0
    %2254 = vmatpush1.msra.mxu0 0.0
    %2255 = vmatprep.subr.mxu0 0.0
    %2256 = vmatpush1.msra.mxu0 0.0
    %2257 = vmatprep.subr.mxu0 0.0
    %2258 = vmatpush1.msra.mxu0 0.0
    %2259 = vmatprep.subr.mxu0 0.0
    %2260 = vmatpush1.msra.mxu0 %v2229
    %2261 = vmatprep.subr.mxu0 0.0
    %2262 = vmatpush1.msra.mxu0 %v2228
    %2263 = vmatprep.subr.mxu0 0.0
    %2264 = vmatpush1.msra.mxu0 %v2227
    %2265 = vmatprep.subr.mxu0 0.0
    %2266 = vmatpush1.msra.mxu0 %v2226
    %2267 = vmatprep.subr.mxu0 0.0
    %2268 = vmatpush1.msra.mxu0 %v2225
    %2269 = vmatprep.subr.mxu0 0.0
    %2270 = vmatpush1.msra.mxu0 %v2224
    %2271 = vmatprep.subr.mxu0 0.0
    %2272 = vmatpush1.msra.mxu0 %v2223
    %2273 = vmatprep.subr.mxu0 0.0
    %2274 = vmatpush1.msra.mxu0 %v2222
    %2275 = vmatprep.subr.mxu0 0.0
    %2276 = vmatpush2.msra.mxu0 0.0
    %2277 = vmatprep.subr.mxu0 0.0
    %2278 = vmatpush2.msra.mxu0 0.0
    %2279 = vmatprep.subr.mxu0 0.0
    %2280 = vmatpush2.msra.mxu0 0.0
    %2281 = vmatprep.subr.mxu0 0.0
    %2282 = vmatpush2.msra.mxu0 0.0
    %2283 = vmatprep.subr.mxu0 0.0
    %2284 = vmatpush2.msra.mxu0 0.0
    %2285 = vmatprep.subr.mxu0 0.0
    %2286 = vmatpush2.msra.mxu0 0.0
    %2287 = vmatprep.subr.mxu0 0.0
    %2288 = vmatpush2.msra.mxu0 0.0
    %2289 = vmatprep.subr.mxu0 0.0
    %2290 = vmatpush2.msra.mxu0 0.0
    %2291 = vmatprep.subr.mxu0 0.0
    %2292 = vmatpush2.msra.mxu0 0.0
    %2293 = vmatprep.subr.mxu0 0.0
    %2294 = vmatpush2.msra.mxu0 0.0
    %2295 = vmatprep.subr.mxu0 0.0
    %2296 = vmatpush2.msra.mxu0 0.0
    %2297 = vmatprep.subr.mxu0 0.0
    %2298 = vmatpush2.msra.mxu0 0.0
    %2299 = vmatprep.subr.mxu0 0.0
    %2300 = vmatpush2.msra.mxu0 0.0
    %2301 = vmatprep.subr.mxu0 0.0
    %2302 = vmatpush2.msra.mxu0 0.0
    %2303 = vmatprep.subr.mxu0 0.0
    %2304 = vmatpush2.msra.mxu0 0.0
    %2305 = vmatprep.subr.mxu0 0.0
    %2306 = vmatpush2.msra.mxu0 0.0
    %2307 = vmatprep.mubr.f32.mxu0 0.0
    %2308 = vmatmul.mubr.f32.gmra.mxu0 %v2241
    %v2309 = vpop.f32.mrf.mxu0
    %v2310 = vadd.f32 %v2235, %v2309
    %v2311 = vpop.f32.mrf.mxu0
    %2312 = vdwg.mxu0
    %vm2313 = vcmask 9216
    %v2314 = vsel %vm2313, %v2310, -inf
    %2315 = vmax.xlane.f32.xlu0 %v2314
    %v2316 = vpop.xlane.xlu0 %2315
    %v2317 = vsub.f32 %v2310, %v2316
    %v2318 = vmul.f32 %v2317, 1.442695
    %v2319 = vpow.pop %v2318
    %v2320 = vsel %vm2313, %v2319, 0.0
    %2321 = vadd.xlane.f32.xlu0 %v2320
    %v2322 = vpop.xlane.xlu0 %2321
    %v2323 = vrcp.pop %v2322
    %v2324 = vmul.f32 %v2319, %v2323
    %2325 = vst.msk [vmem:[%s6] sm:$0x3] %vm2313, %v2324
    // Predicated region
    $region26: #{order_network_forward.1} parent=1 // pred_check
      _
    $region27: #{order_network_forward.1} parent=1 // pred_check_branch
      %2327 = sbr.rel (0) target = $region29
    $region28: #{order_network_forward.1} parent=1 // pred_region
      _
    $region29: #{order_network_forward.1} parent=1 // pred_fallthru
      _
    // Predicated region
    $region30: #{order_network_forward.1} parent=1 // pred_check
      _
    $region31: #{order_network_forward.1} parent=1 // pred_check_branch
      %2329 = sbr.rel (0) target = $region33
    $region32: #{order_network_forward.1} parent=1 // pred_region
      %s2331 = ssub.s32 256, 256
      %2332 = vsyncadd [#allocation3], %s2331
      %s2333 = sshll.u32 [#allocation2], 4
      %s2334 = int_to_ptr.vmem [resolvable:$true] %s2333
      %2339 = dma.vmem_to_hbm [thread:$0]  %s2334, 256, %s7, [#allocation3], 128, 128, 8
    $region33: #{order_network_forward.1} parent=1 // pred_fallthru
      _
    // Predicated region
    $region34: #{order_network_forward.1} parent=1 // pred_check
      _
    $region35: #{order_network_forward.1} parent=1 // pred_check_branch
      %2341 = sbr.rel (0) target = $region37
    $region36: #{order_network_forward.1} parent=1 // pred_region
      _
    $region37: #{order_network_forward.1} parent=1 // pred_fallthru
      _
    // Predicated region
    $region38: #{order_network_forward.1} parent=1 // pred_check
      _
    $region39: #{order_network_forward.1} parent=1 // pred_check_branch
      %2343 = sbr.rel (0) target = $region41
    $region40: #{order_network_forward.1} parent=1 // pred_region
      %2344 = dma.done [#allocation3], 256
    $region41: #{order_network_forward.1} parent=1 // pred_fallthru
      _
    %2345 = vsyncpa [#allocation3], 1

</llo_original>
